<compile_context>
chip_gen: v7x
topology: tpu7x:2x2x1
jax: 0.10.0
libtpu: 0.0.40
codegen_flags: <defaults>
</compile_context>

<pallas_src>
import functools

import jax
import jax.numpy as jnp
from jax.experimental import pallas as pl
from jax.experimental.pallas import tpu as pltpu

EPS = 1e-5
NEG_SLOPE = 0.1
PAD = 128  # zero-region width left of / between / right of images in the conv1
           # scratch; multiple of 128 (aligned stores), multiple of W, >= W+1.


def resblock_kernel(x_ref, w1c_ref, g1_ref, b1_ref, w2c_ref, g2_ref, b2_ref,
                    o_ref, hbuf_ref, *, N, H, W):
    # Layout (channel-major, lane-dense):
    #   x_ref, o_ref : (C, N*H*W) f32   channels on sublanes, N*HW on lanes
    #   w1c_ref      : (C, Cm, 1)  f32  w1c[ci, co, 0]              = W1[co, ci]
    #   w2c_ref      : (Cm*9, C, 1) f32 w2c[ci*9+ky*3+kx, co, 0]    = W2[co, ci, ky, kx]
    #   g*/b*_ref    : (Cm,1)/(C,1) f32 BN gamma/beta column vectors
    #   hbuf_ref     : (Cm, PAD + N*HW + (N-1)*PAD + PAD) f32 scratch
    #                  [zeros | image0 | zeros | image1 | ... | zeros]
    C, _ = x_ref.shape
    Cm = hbuf_ref.shape[0]
    HW = H * W
    SEG = HW + PAD                       # per-image stride inside the frame
    FRAME = N * HW + (N - 1) * PAD       # accumulation frame (images + gaps)
    inv_cnt = 1.0 / float(N * HW)        # BN stats over all of N,H,W per channel

    def bn_scale(var, gamma_col):
        return jax.lax.rsqrt(var + EPS) * gamma_col   # (rows,1) math, EUP rsqrt

    def lrelu(y):
        return jnp.maximum(y, NEG_SLOPE * y)

    # ---- zero only the pad/gap columns (data columns fully overwritten) -------
    zeros_pad = jnp.zeros((Cm, PAD), jnp.float32)
    hbuf_ref[:, 0:PAD] = zeros_pad
    for n in range(N - 1):
        hbuf_ref[:, PAD + n * SEG + HW:PAD + (n + 1) * SEG] = zeros_pad
    hbuf_ref[:, PAD + FRAME:] = zeros_pad

    # ---- ConvBlock 1: 1x1 conv as C broadcast FMAs on the (Cm, N*HW) slab -----
    acc1 = w1c_ref[0] * x_ref[0:1, :]                 # (Cm,1)*(1,NHW) -> (Cm,NHW)
    for ci in range(1, C):
        acc1 = acc1 + w1c_ref[ci] * x_ref[ci:ci + 1, :]

    mean1 = jnp.sum(acc1, axis=1, keepdims=True) * inv_cnt        # lane reduce
    d1 = acc1 - mean1
    var1 = jnp.sum(d1 * d1, axis=1, keepdims=True) * inv_cnt
    h = lrelu(d1 * bn_scale(var1, g1_ref[...]) + b1_ref[...])     # (Cm, N*HW)

    # Dense, 128-aligned stores of the images into the padded scratch.
    for n in range(N):
        hbuf_ref[:, PAD + n * SEG:PAD + n * SEG + HW] = h[:, n * HW:(n + 1) * HW]

    # ---- ConvBlock 2: 3x3 conv as 9 shifted taps FMA'd into one (C, FRAME) slab
    # Only the two column-wrap masks are needed; dy=+-1 off-image reads hit the
    # zero pads/gaps.  col % W is the in-image x coordinate for every data
    # column because SEG is a multiple of W.
    col = jax.lax.broadcasted_iota(jnp.int32, (1, FRAME), 1)
    xcoord = col % W
    not_left_edge = xcoord != 0            # needed for dx = -1 taps
    not_right_edge = xcoord != (W - 1)     # needed for dx = +1 taps

    acc2 = None
    for ky in range(3):
        for kx in range(3):
            shift = (ky - 1) * W + (kx - 1)
            t = hbuf_ref[:, PAD + shift:PAD + shift + FRAME]      # (Cm, FRAME)
            if kx == 0:
                t = jnp.where(not_left_edge, t, 0.0)
            elif kx == 2:
                t = jnp.where(not_right_edge, t, 0.0)
            for ci in range(Cm):
                term = w2c_ref[ci * 9 + ky * 3 + kx] * t[ci:ci + 1, :]  # (C,1)*(1,FRAME)
                acc2 = term if acc2 is None else acc2 + term            # (C, FRAME)

    # BN2 statistics over the valid (non-gap) columns only.
    mean2 = sum(jnp.sum(acc2[:, n * SEG:n * SEG + HW], axis=1, keepdims=True)
                for n in range(N)) * inv_cnt
    diffs = [acc2[:, n * SEG:n * SEG + HW] - mean2 for n in range(N)]
    var2 = sum(jnp.sum(d * d, axis=1, keepdims=True) for d in diffs) * inv_cnt
    scale2 = bn_scale(var2, g2_ref[...])
    beta2 = b2_ref[...]

    # Residual add + dense lane-aligned output stores (x read at point of use).
    for n in range(N):
        y = lrelu(diffs[n] * scale2 + beta2)
        o_ref[:, n * HW:(n + 1) * HW] = x_ref[:, n * HW:(n + 1) * HW] + y


@jax.jit
def resblock_forward(x_nchw, w1_pt, g1, b1, w2_pt, g2, b2):
    # x_nchw: (N, C, H, W) f32; w1_pt: (Cm, C, 1, 1); w2_pt: (C, Cm, 3, 3).
    N, C, H, W = x_nchw.shape
    Cm = w1_pt.shape[0]
    HW = H * W
    assert W + 1 <= PAD and PAD % W == 0 and PAD % 128 == 0
    assert HW % 128 == 0
    HBUF_W = N * HW + (N + 1) * PAD

    # Channel-major, lane-dense kernel layout (C, N*H*W).  The transpose is an
    # ~8 KiB XLA copy at this size — negligible next to launch/DMA overhead.
    xc = jnp.transpose(x_nchw, (1, 0, 2, 3)).reshape(C, N * HW)

    # Conv weights as per-input-channel column vectors (output channels on the
    # sublane axis) so one broadcast FMA updates all output channels at once.
    w1c = jnp.transpose(w1_pt.reshape(Cm, C), (1, 0)).reshape(C, Cm, 1)
    w2c = jnp.transpose(w2_pt.reshape(C, Cm * 9), (1, 0)).reshape(Cm * 9, C, 1)
    g1c, b1c = g1.reshape(Cm, 1), b1.reshape(Cm, 1)
    g2c, b2c = g2.reshape(C, 1), b2.reshape(C, 1)

    vmem = pl.BlockSpec(memory_space=pltpu.MemorySpace.VMEM)

    flops = (2 * N * HW * C * Cm            # 1x1 conv
             + 2 * N * HW * 9 * Cm * C      # 3x3 conv
             + 12 * N * HW * (C + Cm))      # BN + LeakyReLU + residual (approx)
    bytes_accessed = 4 * (2 * N * C * HW + w1c.size + w2c.size + 2 * (C + Cm))

    out = pl.pallas_call(
        functools.partial(resblock_kernel, N=N, H=H, W=W),
        out_shape=jax.ShapeDtypeStruct((C, N * HW), jnp.float32),
        in_specs=[vmem] * 7,
        out_specs=vmem,
        scratch_shapes=[pltpu.VMEM((Cm, HBUF_W), jnp.float32)],
        compiler_params=pltpu.CompilerParams(
            # Padded working set is ~0.25 MiB; 2 MiB leaves compiler headroom
            # and stays far below every generation's scoped-VMEM default.
            vmem_limit_bytes=2 * 1024 * 1024),
        cost_estimate=pl.CostEstimate(
            flops=flops, transcendentals=C + Cm,
            bytes_accessed=bytes_accessed),
    )(xc, w1c, g1c, b1c, w2c, g2c, b2c)

    return jnp.transpose(out.reshape(C, N, H, W), (1, 0, 2, 3))


def _reference(x, w1_pt, g1, b1, w2_pt, g2, b2):
    # Pure-JAX reference built from lax.conv (PyTorch OIHW weights) at HIGHEST
    # precision; training-mode BN with biased variance; LeakyReLU(0.1); residual.
    def convblock(inp, w, g, b):
        k = w.shape[-1]
        pad = (k - 1) // 2
        y = jax.lax.conv_general_dilated(
            inp, w, window_strides=(1, 1), padding=[(pad, pad), (pad, pad)],
            dimension_numbers=("NCHW", "OIHW", "NCHW"),
            precision=jax.lax.Precision.HIGHEST)
        mean = y.mean(axis=(0, 2, 3), keepdims=True)
        var = ((y - mean) ** 2).mean(axis=(0, 2, 3), keepdims=True)
        y = ((y - mean) * jax.lax.rsqrt(var + EPS) * g.reshape(1, -1, 1, 1)
             + b.reshape(1, -1, 1, 1))
        return jnp.where(y > 0, y, NEG_SLOPE * y)

    h = convblock(x, w1_pt, g1, b1)
    y = convblock(h, w2_pt, g2, b2)
    return x + y


if __name__ == "__main__":
    key = jax.random.PRNGKey(0)
    N, C, H, W = 2, 4, 16, 16
    Cm = C // 2

    k_x, k_w1, k_w2, k_g1, k_b1, k_g2, k_b2 = jax.random.split(key, 7)

    x = jax.random.normal(k_x, (N, C, H, W), jnp.float32)

    # PyTorch-layout parameters.
    w1_pt = jax.random.normal(k_w1, (Cm, C, 1, 1), jnp.float32) * 0.1  # Conv1x1
    w2_pt = jax.random.normal(k_w2, (C, Cm, 3, 3), jnp.float32) * 0.1  # Conv3x3
    g1 = 1.0 + 0.1 * jax.random.normal(k_g1, (Cm,), jnp.float32)       # BN1 gamma
    b1 = 0.1 * jax.random.normal(k_b1, (Cm,), jnp.float32)             # BN1 beta
    g2 = 1.0 + 0.1 * jax.random.normal(k_g2, (C,), jnp.float32)        # BN2 gamma
    b2 = 0.1 * jax.random.normal(k_b2, (C,), jnp.float32)              # BN2 beta

    out = resblock_forward(x, w1_pt, g1, b1, w2_pt, g2, b2)
    out = jax.block_until_ready(out)

    ref = _reference(x, w1_pt, g1, b1, w2_pt, g2, b2)
    assert out.shape == (N, C, H, W)
    err = jnp.max(jnp.abs(out - ref))
    assert jnp.allclose(out, ref, rtol=1e-4, atol=2e-4), f"mismatch vs reference, max err {err}"

    print("KERNEL_OK")
</pallas_src>

<mosaic_0001>
module attributes {stable_mosaic.version = 11 : i64} {
  func.func @resblock_kernel(%arg0: memref<4x512xf32, #tpu.memory_space<vmem>>, %arg1: memref<4x2x1xf32, #tpu.memory_space<vmem>>, %arg2: memref<2x1xf32, #tpu.memory_space<vmem>>, %arg3: memref<2x1xf32, #tpu.memory_space<vmem>>, %arg4: memref<18x4x1xf32, #tpu.memory_space<vmem>>, %arg5: memref<4x1xf32, #tpu.memory_space<vmem>>, %arg6: memref<4x1xf32, #tpu.memory_space<vmem>>, %arg7: memref<4x512xf32, #tpu.memory_space<vmem>>, %arg8: memref<2x896xf32, #tpu.memory_space<vmem>>) attributes {dimension_semantics = [], scalar_prefetch = 0 : i64, scratch_operands = 1 : i64, tpu.core_type = #tpu.core_type<tc>} {
    %cst = arith.constant 0.000000e+00 : f32
    %0 = vector.broadcast %cst : f32 to vector<2x128xf32>
    %c0 = arith.constant 0 : index
    %c0_0 = arith.constant 0 : index
    %1 = vector.load %arg8[%c0, %c0_0] : memref<2x896xf32, #tpu.memory_space<vmem>>, vector<2x128xf32>
    tpu.vector_store %arg8[%c0, %c0_0], %0 {strides = array<i32>} : memref<2x896xf32, #tpu.memory_space<vmem>>, vector<2x128xf32>,
    %c0_1 = arith.constant 0 : index
    %c384 = arith.constant 384 : index
    %2 = vector.load %arg8[%c0_1, %c384] : memref<2x896xf32, #tpu.memory_space<vmem>>, vector<2x128xf32>
    tpu.vector_store %arg8[%c0_1, %c384], %0 {strides = array<i32>} : memref<2x896xf32, #tpu.memory_space<vmem>>, vector<2x128xf32>,
    %c0_2 = arith.constant 0 : index
    %c768 = arith.constant 768 : index
    %3 = vector.load %arg8[%c0_2, %c768] : memref<2x896xf32, #tpu.memory_space<vmem>>, vector<2x128xf32>
    tpu.vector_store %arg8[%c0_2, %c768], %0 {strides = array<i32>} : memref<2x896xf32, #tpu.memory_space<vmem>>, vector<2x128xf32>,
    %c0_3 = arith.constant 0 : index
    %c0_4 = arith.constant 0 : index
    %c0_5 = arith.constant 0 : index
    %4 = vector.load %arg1[%c0_3, %c0_4, %c0_5] : memref<4x2x1xf32, #tpu.memory_space<vmem>>, vector<1x2x1xf32>
    %5 = vector.shape_cast %4 : vector<1x2x1xf32> to vector<2x1xf32>
    %c0_6 = arith.constant 0 : index
    %c0_7 = arith.constant 0 : index
    %6 = vector.load %arg0[%c0_6, %c0_7] : memref<4x512xf32, #tpu.memory_space<vmem>>, vector<1x512xf32>
    %7 = vector.broadcast %5 : vector<2x1xf32> to vector<2x512xf32>
    %8 = vector.broadcast %6 : vector<1x512xf32> to vector<2x512xf32>
    %9 = arith.mulf %7, %8 : vector<2x512xf32>
    %c1 = arith.constant 1 : index
    %c0_8 = arith.constant 0 : index
    %c0_9 = arith.constant 0 : index
    %10 = vector.load %arg1[%c1, %c0_8, %c0_9] : memref<4x2x1xf32, #tpu.memory_space<vmem>>, vector<1x2x1xf32>
    %11 = vector.shape_cast %10 : vector<1x2x1xf32> to vector<2x1xf32>
    %c1_10 = arith.constant 1 : index
    %c0_11 = arith.constant 0 : index
    %12 = vector.load %arg0[%c1_10, %c0_11] : memref<4x512xf32, #tpu.memory_space<vmem>>, vector<1x512xf32>
    %13 = vector.broadcast %11 : vector<2x1xf32> to vector<2x512xf32>
    %14 = vector.broadcast %12 : vector<1x512xf32> to vector<2x512xf32>
    %15 = arith.mulf %13, %14 : vector<2x512xf32>
    %16 = arith.addf %9, %15 : vector<2x512xf32>
    %c2 = arith.constant 2 : index
    %c0_12 = arith.constant 0 : index
    %c0_13 = arith.constant 0 : index
    %17 = vector.load %arg1[%c2, %c0_12, %c0_13] : memref<4x2x1xf32, #tpu.memory_space<vmem>>, vector<1x2x1xf32>
    %18 = vector.shape_cast %17 : vector<1x2x1xf32> to vector<2x1xf32>
    %c2_14 = arith.constant 2 : index
    %c0_15 = arith.constant 0 : index
    %19 = vector.load %arg0[%c2_14, %c0_15] : memref<4x512xf32, #tpu.memory_space<vmem>>, vector<1x512xf32>
    %20 = vector.broadcast %18 : vector<2x1xf32> to vector<2x512xf32>
    %21 = vector.broadcast %19 : vector<1x512xf32> to vector<2x512xf32>
    %22 = arith.mulf %20, %21 : vector<2x512xf32>
    %23 = arith.addf %16, %22 : vector<2x512xf32>
    %c3 = arith.constant 3 : index
    %c0_16 = arith.constant 0 : index
    %c0_17 = arith.constant 0 : index
    %24 = vector.load %arg1[%c3, %c0_16, %c0_17] : memref<4x2x1xf32, #tpu.memory_space<vmem>>, vector<1x2x1xf32>
    %25 = vector.shape_cast %24 : vector<1x2x1xf32> to vector<2x1xf32>
    %c3_18 = arith.constant 3 : index
    %c0_19 = arith.constant 0 : index
    %26 = vector.load %arg0[%c3_18, %c0_19] : memref<4x512xf32, #tpu.memory_space<vmem>>, vector<1x512xf32>
    %27 = vector.broadcast %25 : vector<2x1xf32> to vector<2x512xf32>
    %28 = vector.broadcast %26 : vector<1x512xf32> to vector<2x512xf32>
    %29 = arith.mulf %27, %28 : vector<2x512xf32>
    %30 = arith.addf %23, %29 : vector<2x512xf32>
    %cst_20 = arith.constant dense<0.000000e+00> : vector<2xf32>
    %31 = vector.multi_reduction <add>, %30, %cst_20 [1] : vector<2x512xf32> to vector<2xf32>
    %32 = vector.shape_cast %31 : vector<2xf32> to vector<2x1xf32>
    %cst_21 = arith.constant 0.001953125 : f32
    %33 = vector.broadcast %cst_21 : f32 to vector<2x1xf32>
    %34 = arith.mulf %32, %33 : vector<2x1xf32>
    %35 = vector.broadcast %34 : vector<2x1xf32> to vector<2x512xf32>
    %36 = arith.subf %30, %35 : vector<2x512xf32>
    %37 = arith.mulf %36, %36 : vector<2x512xf32>
    %cst_22 = arith.constant dense<0.000000e+00> : vector<2xf32>
    %38 = vector.multi_reduction <add>, %37, %cst_22 [1] : vector<2x512xf32> to vector<2xf32>
    %39 = vector.shape_cast %38 : vector<2xf32> to vector<2x1xf32>
    %cst_23 = arith.constant 0.001953125 : f32
    %40 = vector.broadcast %cst_23 : f32 to vector<2x1xf32>
    %41 = arith.mulf %39, %40 : vector<2x1xf32>
    %c0_24 = arith.constant 0 : index
    %c0_25 = arith.constant 0 : index
    %42 = vector.load %arg2[%c0_24, %c0_25] : memref<2x1xf32, #tpu.memory_space<vmem>>, vector<2x1xf32>
    %cst_26 = arith.constant 9.99999974E-6 : f32
    %43 = vector.broadcast %cst_26 : f32 to vector<2x1xf32>
    %44 = arith.addf %41, %43 : vector<2x1xf32>
    %45 = math.rsqrt %44 : vector<2x1xf32>
    %46 = arith.mulf %45, %42 : vector<2x1xf32>
    %47 = vector.broadcast %46 : vector<2x1xf32> to vector<2x512xf32>
    %48 = arith.mulf %36, %47 : vector<2x512xf32>
    %c0_27 = arith.constant 0 : index
    %c0_28 = arith.constant 0 : index
    %49 = vector.load %arg3[%c0_27, %c0_28] : memref<2x1xf32, #tpu.memory_space<vmem>>, vector<2x1xf32>
    %50 = vector.broadcast %49 : vector<2x1xf32> to vector<2x512xf32>
    %51 = arith.addf %48, %50 : vector<2x512xf32>
    %cst_29 = arith.constant 1.000000e-01 : f32
    %52 = vector.broadcast %cst_29 : f32 to vector<2x512xf32>
    %53 = arith.mulf %52, %51 : vector<2x512xf32>
    %54 = arith.maximumf %51, %53 : vector<2x512xf32>
    %55 = vector.extract_strided_slice %54 {offsets = [0, 0], sizes = [2, 256], strides = [1, 1]} : vector<2x512xf32> to vector<2x256xf32>
    %c0_30 = arith.constant 0 : index
    %c128 = arith.constant 128 : index
    %56 = vector.load %arg8[%c0_30, %c128] : memref<2x896xf32, #tpu.memory_space<vmem>>, vector<2x256xf32>
    tpu.vector_store %arg8[%c0_30, %c128], %55 {strides = array<i32>} : memref<2x896xf32, #tpu.memory_space<vmem>>, vector<2x256xf32>,
    %57 = vector.extract_strided_slice %54 {offsets = [0, 256], sizes = [2, 256], strides = [1, 1]} : vector<2x512xf32> to vector<2x256xf32>
    %c0_31 = arith.constant 0 : index
    %c512 = arith.constant 512 : index
    %58 = vector.load %arg8[%c0_31, %c512] : memref<2x896xf32, #tpu.memory_space<vmem>>, vector<2x256xf32>
    tpu.vector_store %arg8[%c0_31, %c512], %57 {strides = array<i32>} : memref<2x896xf32, #tpu.memory_space<vmem>>, vector<2x256xf32>,
    %59 = tpu.iota {dimensions = array<i32: 1>} : vector<1x640xi32>
    %c16_i32 = arith.constant 16 : i32
    %c0_i32 = arith.constant 0 : i32
    %60 = arith.cmpi eq, %c16_i32, %c0_i32 : i32
    %c1_i32 = arith.constant 1 : i32
    %61 = arith.select %60, %c1_i32, %c16_i32 : i32
    %62 = vector.broadcast %61 : i32 to vector<1x640xi32>
    %63 = arith.remsi %59, %62 : vector<1x640xi32>
    %c0_i32_32 = arith.constant 0 : i32
    %64 = vector.broadcast %c0_i32_32 : i32 to vector<1x640xi32>
    %65 = arith.cmpi ne, %63, %64 : vector<1x640xi32>
    %c0_i32_33 = arith.constant 0 : i32
    %66 = vector.broadcast %c0_i32_33 : i32 to vector<1x640xi32>
    %67 = arith.cmpi slt, %63, %66 : vector<1x640xi32>
    %c0_i32_34 = arith.constant 0 : i32
    %68 = arith.cmpi slt, %61, %c0_i32_34 : i32
    %69 = vector.broadcast %68 : i1 to vector<1x640xi1>
    %70 = vector.broadcast %69 : vector<1x640xi1> to vector<1x640xi1>
    %71 = arith.xori %67, %70 : vector<1x640xi1>
    %72 = arith.andi %71, %65 : vector<1x640xi1>
    %73 = vector.broadcast %61 : i32 to vector<1x640xi32>
    %74 = arith.addi %63, %73 : vector<1x640xi32>
    %75 = arith.select %72, %74, %63 : vector<1x640xi1>, vector<1x640xi32>
    %c0_i32_35 = arith.constant 0 : i32
    %76 = vector.broadcast %c0_i32_35 : i32 to vector<1x640xi32>
    %77 = arith.cmpi ne, %75, %76 : vector<1x640xi32>
    %c15_i32 = arith.constant 15 : i32
    %78 = vector.broadcast %c15_i32 : i32 to vector<1x640xi32>
    %79 = arith.cmpi ne, %75, %78 : vector<1x640xi32>
    %c0_36 = arith.constant 0 : index
    %c111 = arith.constant 111 : index
    %80 = vector.load %arg8[%c0_36, %c111] : memref<2x896xf32, #tpu.memory_space<vmem>>, vector<2x640xf32>
    %cst_37 = arith.constant 0.000000e+00 : f32
    %81 = vector.shape_cast %77 : vector<1x640xi1> to vector<1x640xi1>
    %82 = vector.broadcast %81 : vector<1x640xi1> to vector<2x640xi1>
    %83 = vector.broadcast %cst_37 : f32 to vector<2x640xf32>
    %84 = arith.select %82, %80, %83 : vector<2x640xi1>, vector<2x640xf32>
    %c0_38 = arith.constant 0 : index
    %c0_39 = arith.constant 0 : index
    %c0_40 = arith.constant 0 : index
    %85 = vector.load %arg4[%c0_38, %c0_39, %c0_40] : memref<18x4x1xf32, #tpu.memory_space<vmem>>, vector<1x4x1xf32>
    %86 = vector.shape_cast %85 : vector<1x4x1xf32> to vector<4x1xf32>
    %87 = vector.extract_strided_slice %84 {offsets = [0, 0], sizes = [1, 640], strides = [1, 1]} : vector<2x640xf32> to vector<1x640xf32>
    %88 = vector.broadcast %86 : vector<4x1xf32> to vector<4x640xf32>
    %89 = vector.broadcast %87 : vector<1x640xf32> to vector<4x640xf32>
    %90 = arith.mulf %88, %89 : vector<4x640xf32>
    %c9 = arith.constant 9 : index
    %c0_41 = arith.constant 0 : index
    %c0_42 = arith.constant 0 : index
    %91 = vector.load %arg4[%c9, %c0_41, %c0_42] : memref<18x4x1xf32, #tpu.memory_space<vmem>>, vector<1x4x1xf32>
    %92 = vector.shape_cast %91 : vector<1x4x1xf32> to vector<4x1xf32>
    %93 = vector.extract_strided_slice %84 {offsets = [1, 0], sizes = [1, 640], strides = [1, 1]} : vector<2x640xf32> to vector<1x640xf32>
    %94 = vector.broadcast %92 : vector<4x1xf32> to vector<4x640xf32>
    %95 = vector.broadcast %93 : vector<1x640xf32> to vector<4x640xf32>
    %96 = arith.mulf %94, %95 : vector<4x640xf32>
    %97 = arith.addf %90, %96 : vector<4x640xf32>
    %c0_43 = arith.constant 0 : index
    %c112 = arith.constant 112 : index
    %98 = vector.load %arg8[%c0_43, %c112] : memref<2x896xf32, #tpu.memory_space<vmem>>, vector<2x640xf32>
    %c1_44 = arith.constant 1 : index
    %c0_45 = arith.constant 0 : index
    %c0_46 = arith.constant 0 : index
    %99 = vector.load %arg4[%c1_44, %c0_45, %c0_46] : memref<18x4x1xf32, #tpu.memory_space<vmem>>, vector<1x4x1xf32>
    %100 = vector.shape_cast %99 : vector<1x4x1xf32> to vector<4x1xf32>
    %101 = vector.extract_strided_slice %98 {offsets = [0, 0], sizes = [1, 640], strides = [1, 1]} : vector<2x640xf32> to vector<1x640xf32>
    %102 = vector.broadcast %100 : vector<4x1xf32> to vector<4x640xf32>
    %103 = vector.broadcast %101 : vector<1x640xf32> to vector<4x640xf32>
    %104 = arith.mulf %102, %103 : vector<4x640xf32>
    %105 = arith.addf %97, %104 : vector<4x640xf32>
    %c10 = arith.constant 10 : index
    %c0_47 = arith.constant 0 : index
    %c0_48 = arith.constant 0 : index
    %106 = vector.load %arg4[%c10, %c0_47, %c0_48] : memref<18x4x1xf32, #tpu.memory_space<vmem>>, vector<1x4x1xf32>
    %107 = vector.shape_cast %106 : vector<1x4x1xf32> to vector<4x1xf32>
    %108 = vector.extract_strided_slice %98 {offsets = [1, 0], sizes = [1, 640], strides = [1, 1]} : vector<2x640xf32> to vector<1x640xf32>
    %109 = vector.broadcast %107 : vector<4x1xf32> to vector<4x640xf32>
    %110 = vector.broadcast %108 : vector<1x640xf32> to vector<4x640xf32>
    %111 = arith.mulf %109, %110 : vector<4x640xf32>
    %112 = arith.addf %105, %111 : vector<4x640xf32>
    %c0_49 = arith.constant 0 : index
    %c113 = arith.constant 113 : index
    %113 = vector.load %arg8[%c0_49, %c113] : memref<2x896xf32, #tpu.memory_space<vmem>>, vector<2x640xf32>
    %cst_50 = arith.constant 0.000000e+00 : f32
    %114 = vector.shape_cast %79 : vector<1x640xi1> to vector<1x640xi1>
    %115 = vector.broadcast %114 : vector<1x640xi1> to vector<2x640xi1>
    %116 = vector.broadcast %cst_50 : f32 to vector<2x640xf32>
    %117 = arith.select %115, %113, %116 : vector<2x640xi1>, vector<2x640xf32>
    %c2_51 = arith.constant 2 : index
    %c0_52 = arith.constant 0 : index
    %c0_53 = arith.constant 0 : index
    %118 = vector.load %arg4[%c2_51, %c0_52, %c0_53] : memref<18x4x1xf32, #tpu.memory_space<vmem>>, vector<1x4x1xf32>
    %119 = vector.shape_cast %118 : vector<1x4x1xf32> to vector<4x1xf32>
    %120 = vector.extract_strided_slice %117 {offsets = [0, 0], sizes = [1, 640], strides = [1, 1]} : vector<2x640xf32> to vector<1x640xf32>
    %121 = vector.broadcast %119 : vector<4x1xf32> to vector<4x640xf32>
    %122 = vector.broadcast %120 : vector<1x640xf32> to vector<4x640xf32>
    %123 = arith.mulf %121, %122 : vector<4x640xf32>
    %124 = arith.addf %112, %123 : vector<4x640xf32>
    %c11 = arith.constant 11 : index
    %c0_54 = arith.constant 0 : index
    %c0_55 = arith.constant 0 : index
    %125 = vector.load %arg4[%c11, %c0_54, %c0_55] : memref<18x4x1xf32, #tpu.memory_space<vmem>>, vector<1x4x1xf32>
    %126 = vector.shape_cast %125 : vector<1x4x1xf32> to vector<4x1xf32>
    %127 = vector.extract_strided_slice %117 {offsets = [1, 0], sizes = [1, 640], strides = [1, 1]} : vector<2x640xf32> to vector<1x640xf32>
    %128 = vector.broadcast %126 : vector<4x1xf32> to vector<4x640xf32>
    %129 = vector.broadcast %127 : vector<1x640xf32> to vector<4x640xf32>
    %130 = arith.mulf %128, %129 : vector<4x640xf32>
    %131 = arith.addf %124, %130 : vector<4x640xf32>
    %c0_56 = arith.constant 0 : index
    %c127 = arith.constant 127 : index
    %132 = vector.load %arg8[%c0_56, %c127] : memref<2x896xf32, #tpu.memory_space<vmem>>, vector<2x640xf32>
    %cst_57 = arith.constant 0.000000e+00 : f32
    %133 = vector.shape_cast %77 : vector<1x640xi1> to vector<1x640xi1>
    %134 = vector.broadcast %133 : vector<1x640xi1> to vector<2x640xi1>
    %135 = vector.broadcast %cst_57 : f32 to vector<2x640xf32>
    %136 = arith.select %134, %132, %135 : vector<2x640xi1>, vector<2x640xf32>
    %c3_58 = arith.constant 3 : index
    %c0_59 = arith.constant 0 : index
    %c0_60 = arith.constant 0 : index
    %137 = vector.load %arg4[%c3_58, %c0_59, %c0_60] : memref<18x4x1xf32, #tpu.memory_space<vmem>>, vector<1x4x1xf32>
    %138 = vector.shape_cast %137 : vector<1x4x1xf32> to vector<4x1xf32>
    %139 = vector.extract_strided_slice %136 {offsets = [0, 0], sizes = [1, 640], strides = [1, 1]} : vector<2x640xf32> to vector<1x640xf32>
    %140 = vector.broadcast %138 : vector<4x1xf32> to vector<4x640xf32>
    %141 = vector.broadcast %139 : vector<1x640xf32> to vector<4x640xf32>
    %142 = arith.mulf %140, %141 : vector<4x640xf32>
    %143 = arith.addf %131, %142 : vector<4x640xf32>
    %c12 = arith.constant 12 : index
    %c0_61 = arith.constant 0 : index
    %c0_62 = arith.constant 0 : index
    %144 = vector.load %arg4[%c12, %c0_61, %c0_62] : memref<18x4x1xf32, #tpu.memory_space<vmem>>, vector<1x4x1xf32>
    %145 = vector.shape_cast %144 : vector<1x4x1xf32> to vector<4x1xf32>
    %146 = vector.extract_strided_slice %136 {offsets = [1, 0], sizes = [1, 640], strides = [1, 1]} : vector<2x640xf32> to vector<1x640xf32>
    %147 = vector.broadcast %145 : vector<4x1xf32> to vector<4x640xf32>
    %148 = vector.broadcast %146 : vector<1x640xf32> to vector<4x640xf32>
    %149 = arith.mulf %147, %148 : vector<4x640xf32>
    %150 = arith.addf %143, %149 : vector<4x640xf32>
    %c0_63 = arith.constant 0 : index
    %c128_64 = arith.constant 128 : index
    %151 = vector.load %arg8[%c0_63, %c128_64] : memref<2x896xf32, #tpu.memory_space<vmem>>, vector<2x640xf32>
    %c4 = arith.constant 4 : index
    %c0_65 = arith.constant 0 : index
    %c0_66 = arith.constant 0 : index
    %152 = vector.load %arg4[%c4, %c0_65, %c0_66] : memref<18x4x1xf32, #tpu.memory_space<vmem>>, vector<1x4x1xf32>
    %153 = vector.shape_cast %152 : vector<1x4x1xf32> to vector<4x1xf32>
    %154 = vector.extract_strided_slice %151 {offsets = [0, 0], sizes = [1, 640], strides = [1, 1]} : vector<2x640xf32> to vector<1x640xf32>
    %155 = vector.broadcast %153 : vector<4x1xf32> to vector<4x640xf32>
    %156 = vector.broadcast %154 : vector<1x640xf32> to vector<4x640xf32>
    %157 = arith.mulf %155, %156 : vector<4x640xf32>
    %158 = arith.addf %150, %157 : vector<4x640xf32>
    %c13 = arith.constant 13 : index
    %c0_67 = arith.constant 0 : index
    %c0_68 = arith.constant 0 : index
    %159 = vector.load %arg4[%c13, %c0_67, %c0_68] : memref<18x4x1xf32, #tpu.memory_space<vmem>>, vector<1x4x1xf32>
    %160 = vector.shape_cast %159 : vector<1x4x1xf32> to vector<4x1xf32>
    %161 = vector.extract_strided_slice %151 {offsets = [1, 0], sizes = [1, 640], strides = [1, 1]} : vector<2x640xf32> to vector<1x640xf32>
    %162 = vector.broadcast %160 : vector<4x1xf32> to vector<4x640xf32>
    %163 = vector.broadcast %161 : vector<1x640xf32> to vector<4x640xf32>
    %164 = arith.mulf %162, %163 : vector<4x640xf32>
    %165 = arith.addf %158, %164 : vector<4x640xf32>
    %c0_69 = arith.constant 0 : index
    %c129 = arith.constant 129 : index
    %166 = vector.load %arg8[%c0_69, %c129] : memref<2x896xf32, #tpu.memory_space<vmem>>, vector<2x640xf32>
    %cst_70 = arith.constant 0.000000e+00 : f32
    %167 = vector.shape_cast %79 : vector<1x640xi1> to vector<1x640xi1>
    %168 = vector.broadcast %167 : vector<1x640xi1> to vector<2x640xi1>
    %169 = vector.broadcast %cst_70 : f32 to vector<2x640xf32>
    %170 = arith.select %168, %166, %169 : vector<2x640xi1>, vector<2x640xf32>
    %c5 = arith.constant 5 : index
    %c0_71 = arith.constant 0 : index
    %c0_72 = arith.constant 0 : index
    %171 = vector.load %arg4[%c5, %c0_71, %c0_72] : memref<18x4x1xf32, #tpu.memory_space<vmem>>, vector<1x4x1xf32>
    %172 = vector.shape_cast %171 : vector<1x4x1xf32> to vector<4x1xf32>
    %173 = vector.extract_strided_slice %170 {offsets = [0, 0], sizes = [1, 640], strides = [1, 1]} : vector<2x640xf32> to vector<1x640xf32>
    %174 = vector.broadcast %172 : vector<4x1xf32> to vector<4x640xf32>
    %175 = vector.broadcast %173 : vector<1x640xf32> to vector<4x640xf32>
    %176 = arith.mulf %174, %175 : vector<4x640xf32>
    %177 = arith.addf %165, %176 : vector<4x640xf32>
    %c14 = arith.constant 14 : index
    %c0_73 = arith.constant 0 : index
    %c0_74 = arith.constant 0 : index
    %178 = vector.load %arg4[%c14, %c0_73, %c0_74] : memref<18x4x1xf32, #tpu.memory_space<vmem>>, vector<1x4x1xf32>
    %179 = vector.shape_cast %178 : vector<1x4x1xf32> to vector<4x1xf32>
    %180 = vector.extract_strided_slice %170 {offsets = [1, 0], sizes = [1, 640], strides = [1, 1]} : vector<2x640xf32> to vector<1x640xf32>
    %181 = vector.broadcast %179 : vector<4x1xf32> to vector<4x640xf32>
    %182 = vector.broadcast %180 : vector<1x640xf32> to vector<4x640xf32>
    %183 = arith.mulf %181, %182 : vector<4x640xf32>
    %184 = arith.addf %177, %183 : vector<4x640xf32>
    %c0_75 = arith.constant 0 : index
    %c143 = arith.constant 143 : index
    %185 = vector.load %arg8[%c0_75, %c143] : memref<2x896xf32, #tpu.memory_space<vmem>>, vector<2x640xf32>
    %cst_76 = arith.constant 0.000000e+00 : f32
    %186 = vector.shape_cast %77 : vector<1x640xi1> to vector<1x640xi1>
    %187 = vector.broadcast %186 : vector<1x640xi1> to vector<2x640xi1>
    %188 = vector.broadcast %cst_76 : f32 to vector<2x640xf32>
    %189 = arith.select %187, %185, %188 : vector<2x640xi1>, vector<2x640xf32>
    %c6 = arith.constant 6 : index
    %c0_77 = arith.constant 0 : index
    %c0_78 = arith.constant 0 : index
    %190 = vector.load %arg4[%c6, %c0_77, %c0_78] : memref<18x4x1xf32, #tpu.memory_space<vmem>>, vector<1x4x1xf32>
    %191 = vector.shape_cast %190 : vector<1x4x1xf32> to vector<4x1xf32>
    %192 = vector.extract_strided_slice %189 {offsets = [0, 0], sizes = [1, 640], strides = [1, 1]} : vector<2x640xf32> to vector<1x640xf32>
    %193 = vector.broadcast %191 : vector<4x1xf32> to vector<4x640xf32>
    %194 = vector.broadcast %192 : vector<1x640xf32> to vector<4x640xf32>
    %195 = arith.mulf %193, %194 : vector<4x640xf32>
    %196 = arith.addf %184, %195 : vector<4x640xf32>
    %c15 = arith.constant 15 : index
    %c0_79 = arith.constant 0 : index
    %c0_80 = arith.constant 0 : index
    %197 = vector.load %arg4[%c15, %c0_79, %c0_80] : memref<18x4x1xf32, #tpu.memory_space<vmem>>, vector<1x4x1xf32>
    %198 = vector.shape_cast %197 : vector<1x4x1xf32> to vector<4x1xf32>
    %199 = vector.extract_strided_slice %189 {offsets = [1, 0], sizes = [1, 640], strides = [1, 1]} : vector<2x640xf32> to vector<1x640xf32>
    %200 = vector.broadcast %198 : vector<4x1xf32> to vector<4x640xf32>
    %201 = vector.broadcast %199 : vector<1x640xf32> to vector<4x640xf32>
    %202 = arith.mulf %200, %201 : vector<4x640xf32>
    %203 = arith.addf %196, %202 : vector<4x640xf32>
    %c0_81 = arith.constant 0 : index
    %c144 = arith.constant 144 : index
    %204 = vector.load %arg8[%c0_81, %c144] : memref<2x896xf32, #tpu.memory_space<vmem>>, vector<2x640xf32>
    %c7 = arith.constant 7 : index
    %c0_82 = arith.constant 0 : index
    %c0_83 = arith.constant 0 : index
    %205 = vector.load %arg4[%c7, %c0_82, %c0_83] : memref<18x4x1xf32, #tpu.memory_space<vmem>>, vector<1x4x1xf32>
    %206 = vector.shape_cast %205 : vector<1x4x1xf32> to vector<4x1xf32>
    %207 = vector.extract_strided_slice %204 {offsets = [0, 0], sizes = [1, 640], strides = [1, 1]} : vector<2x640xf32> to vector<1x640xf32>
    %208 = vector.broadcast %206 : vector<4x1xf32> to vector<4x640xf32>
    %209 = vector.broadcast %207 : vector<1x640xf32> to vector<4x640xf32>
    %210 = arith.mulf %208, %209 : vector<4x640xf32>
    %211 = arith.addf %203, %210 : vector<4x640xf32>
    %c16 = arith.constant 16 : index
    %c0_84 = arith.constant 0 : index
    %c0_85 = arith.constant 0 : index
    %212 = vector.load %arg4[%c16, %c0_84, %c0_85] : memref<18x4x1xf32, #tpu.memory_space<vmem>>, vector<1x4x1xf32>
    %213 = vector.shape_cast %212 : vector<1x4x1xf32> to vector<4x1xf32>
    %214 = vector.extract_strided_slice %204 {offsets = [1, 0], sizes = [1, 640], strides = [1, 1]} : vector<2x640xf32> to vector<1x640xf32>
    %215 = vector.broadcast %213 : vector<4x1xf32> to vector<4x640xf32>
    %216 = vector.broadcast %214 : vector<1x640xf32> to vector<4x640xf32>
    %217 = arith.mulf %215, %216 : vector<4x640xf32>
    %218 = arith.addf %211, %217 : vector<4x640xf32>
    %c0_86 = arith.constant 0 : index
    %c145 = arith.constant 145 : index
    %219 = vector.load %arg8[%c0_86, %c145] : memref<2x896xf32, #tpu.memory_space<vmem>>, vector<2x640xf32>
    %cst_87 = arith.constant 0.000000e+00 : f32
    %220 = vector.shape_cast %79 : vector<1x640xi1> to vector<1x640xi1>
    %221 = vector.broadcast %220 : vector<1x640xi1> to vector<2x640xi1>
    %222 = vector.broadcast %cst_87 : f32 to vector<2x640xf32>
    %223 = arith.select %221, %219, %222 : vector<2x640xi1>, vector<2x640xf32>
    %c8 = arith.constant 8 : index
    %c0_88 = arith.constant 0 : index
    %c0_89 = arith.constant 0 : index
    %224 = vector.load %arg4[%c8, %c0_88, %c0_89] : memref<18x4x1xf32, #tpu.memory_space<vmem>>, vector<1x4x1xf32>
    %225 = vector.shape_cast %224 : vector<1x4x1xf32> to vector<4x1xf32>
    %226 = vector.extract_strided_slice %223 {offsets = [0, 0], sizes = [1, 640], strides = [1, 1]} : vector<2x640xf32> to vector<1x640xf32>
    %227 = vector.broadcast %225 : vector<4x1xf32> to vector<4x640xf32>
    %228 = vector.broadcast %226 : vector<1x640xf32> to vector<4x640xf32>
    %229 = arith.mulf %227, %228 : vector<4x640xf32>
    %230 = arith.addf %218, %229 : vector<4x640xf32>
    %c17 = arith.constant 17 : index
    %c0_90 = arith.constant 0 : index
    %c0_91 = arith.constant 0 : index
    %231 = vector.load %arg4[%c17, %c0_90, %c0_91] : memref<18x4x1xf32, #tpu.memory_space<vmem>>, vector<1x4x1xf32>
    %232 = vector.shape_cast %231 : vector<1x4x1xf32> to vector<4x1xf32>
    %233 = vector.extract_strided_slice %223 {offsets = [1, 0], sizes = [1, 640], strides = [1, 1]} : vector<2x640xf32> to vector<1x640xf32>
    %234 = vector.broadcast %232 : vector<4x1xf32> to vector<4x640xf32>
    %235 = vector.broadcast %233 : vector<1x640xf32> to vector<4x640xf32>
    %236 = arith.mulf %234, %235 : vector<4x640xf32>
    %237 = arith.addf %230, %236 : vector<4x640xf32>
    %238 = vector.extract_strided_slice %237 {offsets = [0, 0], sizes = [4, 256], strides = [1, 1]} : vector<4x640xf32> to vector<4x256xf32>
    %cst_92 = arith.constant dense<0.000000e+00> : vector<4xf32>
    %239 = vector.multi_reduction <add>, %238, %cst_92 [1] : vector<4x256xf32> to vector<4xf32>
    %240 = vector.shape_cast %239 : vector<4xf32> to vector<4x1xf32>
    %cst_93 = arith.constant 0.000000e+00 : f32
    %241 = vector.broadcast %cst_93 : f32 to vector<4x1xf32>
    %242 = arith.addf %241, %240 : vector<4x1xf32>
    %243 = vector.extract_strided_slice %237 {offsets = [0, 384], sizes = [4, 256], strides = [1, 1]} : vector<4x640xf32> to vector<4x256xf32>
    %cst_94 = arith.constant dense<0.000000e+00> : vector<4xf32>
    %244 = vector.multi_reduction <add>, %243, %cst_94 [1] : vector<4x256xf32> to vector<4xf32>
    %245 = vector.shape_cast %244 : vector<4xf32> to vector<4x1xf32>
    %246 = arith.addf %242, %245 : vector<4x1xf32>
    %cst_95 = arith.constant 0.001953125 : f32
    %247 = vector.broadcast %cst_95 : f32 to vector<4x1xf32>
    %248 = arith.mulf %246, %247 : vector<4x1xf32>
    %249 = vector.extract_strided_slice %237 {offsets = [0, 0], sizes = [4, 256], strides = [1, 1]} : vector<4x640xf32> to vector<4x256xf32>
    %250 = vector.broadcast %248 : vector<4x1xf32> to vector<4x256xf32>
    %251 = arith.subf %249, %250 : vector<4x256xf32>
    %252 = vector.extract_strided_slice %237 {offsets = [0, 384], sizes = [4, 256], strides = [1, 1]} : vector<4x640xf32> to vector<4x256xf32>
    %253 = vector.broadcast %248 : vector<4x1xf32> to vector<4x256xf32>
    %254 = arith.subf %252, %253 : vector<4x256xf32>
    %255 = arith.mulf %251, %251 : vector<4x256xf32>
    %cst_96 = arith.constant dense<0.000000e+00> : vector<4xf32>
    %256 = vector.multi_reduction <add>, %255, %cst_96 [1] : vector<4x256xf32> to vector<4xf32>
    %257 = vector.shape_cast %256 : vector<4xf32> to vector<4x1xf32>
    %cst_97 = arith.constant 0.000000e+00 : f32
    %258 = vector.broadcast %cst_97 : f32 to vector<4x1xf32>
    %259 = arith.addf %258, %257 : vector<4x1xf32>
    %260 = arith.mulf %254, %254 : vector<4x256xf32>
    %cst_98 = arith.constant dense<0.000000e+00> : vector<4xf32>
    %261 = vector.multi_reduction <add>, %260, %cst_98 [1] : vector<4x256xf32> to vector<4xf32>
    %262 = vector.shape_cast %261 : vector<4xf32> to vector<4x1xf32>
    %263 = arith.addf %259, %262 : vector<4x1xf32>
    %cst_99 = arith.constant 0.001953125 : f32
    %264 = vector.broadcast %cst_99 : f32 to vector<4x1xf32>
    %265 = arith.mulf %263, %264 : vector<4x1xf32>
    %c0_100 = arith.constant 0 : index
    %c0_101 = arith.constant 0 : index
    %266 = vector.load %arg5[%c0_100, %c0_101] : memref<4x1xf32, #tpu.memory_space<vmem>>, vector<4x1xf32>
    %cst_102 = arith.constant 9.99999974E-6 : f32
    %267 = vector.broadcast %cst_102 : f32 to vector<4x1xf32>
    %268 = arith.addf %265, %267 : vector<4x1xf32>
    %269 = math.rsqrt %268 : vector<4x1xf32>
    %270 = arith.mulf %269, %266 : vector<4x1xf32>
    %c0_103 = arith.constant 0 : index
    %c0_104 = arith.constant 0 : index
    %271 = vector.load %arg6[%c0_103, %c0_104] : memref<4x1xf32, #tpu.memory_space<vmem>>, vector<4x1xf32>
    %272 = vector.broadcast %270 : vector<4x1xf32> to vector<4x256xf32>
    %273 = arith.mulf %251, %272 : vector<4x256xf32>
    %274 = vector.broadcast %271 : vector<4x1xf32> to vector<4x256xf32>
    %275 = arith.addf %273, %274 : vector<4x256xf32>
    %cst_105 = arith.constant 1.000000e-01 : f32
    %276 = vector.broadcast %cst_105 : f32 to vector<4x256xf32>
    %277 = arith.mulf %276, %275 : vector<4x256xf32>
    %278 = arith.maximumf %275, %277 : vector<4x256xf32>
    %c0_106 = arith.constant 0 : index
    %c0_107 = arith.constant 0 : index
    %279 = vector.load %arg0[%c0_106, %c0_107] : memref<4x512xf32, #tpu.memory_space<vmem>>, vector<4x256xf32>
    %280 = arith.addf %279, %278 : vector<4x256xf32>
    %c0_108 = arith.constant 0 : index
    %c0_109 = arith.constant 0 : index
    %281 = vector.load %arg7[%c0_108, %c0_109] : memref<4x512xf32, #tpu.memory_space<vmem>>, vector<4x256xf32>
    tpu.vector_store %arg7[%c0_108, %c0_109], %280 {strides = array<i32>} : memref<4x512xf32, #tpu.memory_space<vmem>>, vector<4x256xf32>,
    %282 = vector.broadcast %270 : vector<4x1xf32> to vector<4x256xf32>
    %283 = arith.mulf %254, %282 : vector<4x256xf32>
    %284 = vector.broadcast %271 : vector<4x1xf32> to vector<4x256xf32>
    %285 = arith.addf %283, %284 : vector<4x256xf32>
    %cst_110 = arith.constant 1.000000e-01 : f32
    %286 = vector.broadcast %cst_110 : f32 to vector<4x256xf32>
    %287 = arith.mulf %286, %285 : vector<4x256xf32>
    %288 = arith.maximumf %285, %287 : vector<4x256xf32>
    %c0_111 = arith.constant 0 : index
    %c256 = arith.constant 256 : index
    %289 = vector.load %arg0[%c0_111, %c256] : memref<4x512xf32, #tpu.memory_space<vmem>>, vector<4x256xf32>
    %290 = arith.addf %289, %288 : vector<4x256xf32>
    %c0_112 = arith.constant 0 : index
    %c256_113 = arith.constant 256 : index
    %291 = vector.load %arg7[%c0_112, %c256_113] : memref<4x512xf32, #tpu.memory_space<vmem>>, vector<4x256xf32>
    tpu.vector_store %arg7[%c0_112, %c256_113], %290 {strides = array<i32>} : memref<4x512xf32, #tpu.memory_space<vmem>>, vector<4x256xf32>,
    return
  }
}

</mosaic_0001>

<llo_original>
// kernel: resblock_forward.1
$region0: #{resblock_forward.1}
  #allocation0 [shape = 'u32[]', space=smem, size = 0x4, offset = 0x4, fixed_abs, tag = 'smem constant byte address 0x4 - core index']
  #allocation1 [shape = 'u32[144,128]{1,0:T(1,128)}', space=vmem, size = 0x12000, scoped, tag = 'internal scratch']
  #allocation2 [shape = 'f32[2,896]{1,0:T(2,128)}', space=vmem, size = 0x1c00, scoped, tag = 'scratch operand']
  %s0 = inlined_call_operand.vmem [shape: f32[4,512], index: 0, kind: input, shape index: {}]
  %s1 = inlined_call_operand.vmem [shape: f32[4,2,1], index: 1, kind: input, shape index: {}]
  %s2 = inlined_call_operand.vmem [shape: f32[2,1], index: 2, kind: input, shape index: {}]
  %s3 = inlined_call_operand.vmem [shape: f32[2,1], index: 3, kind: input, shape index: {}]
  %s4 = inlined_call_operand.vmem [shape: f32[18,4,1], index: 4, kind: input, shape index: {}]
  %s5 = inlined_call_operand.vmem [shape: f32[4,1], index: 5, kind: input, shape index: {}]
  %s6 = inlined_call_operand.vmem [shape: f32[4,1], index: 6, kind: input, shape index: {}]
  %s7 = inlined_call_operand.vmem [shape: f32[4,512], index: 7, kind: output, shape index: {}]
  %s8 = sld [smem:[#allocation0]]
  $region38: #{resblock_forward.1} parent=0
    _
  %s10 = ssub.s32 1, %s8
  %s11 = scalar_select 0, %s10, %s8
  // Predicated region
  $region2: #{resblock_forward.1} parent=0 // pred_check
    _
  $region3: #{resblock_forward.1} parent=0 // pred_check_branch
    %13 = sbr.rel (0) target = $region5
  $region4: #{resblock_forward.1} parent=0 // pred_region
    _
  $region5: #{resblock_forward.1} parent=0 // pred_fallthru
    _
  // Predicated region
  $region6: #{resblock_forward.1} parent=0 // pred_check
    _
  $region7: #{resblock_forward.1} parent=0 // pred_check_branch
    %15 = sbr.rel (0) target = $region9
  $region8: #{resblock_forward.1} parent=0 // pred_region
    _
  $region9: #{resblock_forward.1} parent=0 // pred_fallthru
    _
  // Predicated region
  $region10: #{resblock_forward.1} parent=0 // pred_check
    _
  $region11: #{resblock_forward.1} parent=0 // pred_check_branch
    %17 = sbr.rel (0) target = $region13
  $region12: #{resblock_forward.1} parent=0 // pred_region
    _
  $region13: #{resblock_forward.1} parent=0 // pred_fallthru
    _
  // Predicated region
  $region14: #{resblock_forward.1} parent=0 // pred_check
    _
  $region15: #{resblock_forward.1} parent=0 // pred_check_branch
    %19 = sbr.rel (0) target = $region17
  $region16: #{resblock_forward.1} parent=0 // pred_region
    _
  $region17: #{resblock_forward.1} parent=0 // pred_fallthru
    _
  // Predicated region
  $region18: #{resblock_forward.1} parent=0 // pred_check
    _
  $region19: #{resblock_forward.1} parent=0 // pred_check_branch
    %21 = sbr.rel (0) target = $region21
  $region20: #{resblock_forward.1} parent=0 // pred_region
    _
  $region21: #{resblock_forward.1} parent=0 // pred_fallthru
    _
  // Predicated region
  $region22: #{resblock_forward.1} parent=0 // pred_check
    _
  $region23: #{resblock_forward.1} parent=0 // pred_check_branch
    %23 = sbr.rel (0) target = $region25
  $region24: #{resblock_forward.1} parent=0 // pred_region
    _
  $region25: #{resblock_forward.1} parent=0 // pred_fallthru
    _
  // Predicated region
  $region26: #{resblock_forward.1} parent=0 // pred_check
    _
  $region27: #{resblock_forward.1} parent=0 // pred_check_branch
    %25 = sbr.rel (0) target = $region29
  $region28: #{resblock_forward.1} parent=0 // pred_region
    _
  $region29: #{resblock_forward.1} parent=0 // pred_fallthru
    _
  %26 = vst [vmem:[#allocation2] sm:$0x3] 0.0
  %27 = vst [vmem:[#allocation2 + $0x6] sm:$0x3] 0.0
  %28 = vst [vmem:[#allocation2 + $0xc] sm:$0x3] 0.0
  %v29 = vld [vmem:[%s1] sm:$0x3]
  %v30 = vld [vmem:[%s0] ss:$4 sm:$0xf]
  %32 = vset.pattern.permute.xlu0 0
  %33 = vperm.xlu0 %32, %v29
  %v34 = vpop.permute.xlu0 %33
  %v37 = vlaneseq
  %v38 = vshrl.u32 %v37, 7
  %v39 = vsub.s32 0, %v38
  %v40 = vrot.slane %v30, %v39
  %v41 = vlaneseq
  %v42 = vshrl.u32 %v41, 7
  %v43 = vsub.s32 1, %v42
  %v44 = vrot.slane %v30, %v43
  %v45 = vlaneseq
  %v46 = vshrl.u32 %v45, 7
  %v47 = vsub.s32 2, %v46
  %v48 = vrot.slane %v30, %v47
  %v49 = vlaneseq
  %v50 = vshrl.u32 %v49, 7
  %v51 = vsub.s32 3, %v50
  %v52 = vrot.slane %v30, %v51
  %v57 = vmul.f32 %v34, %v40
  %v58 = vmul.f32 %v34, %v44
  %v59 = vmul.f32 %v34, %v48
  %v60 = vmul.f32 %v34, %v52
  %s61 = scalar_lea.vmem %s1, 2
  %v62 = vld [vmem:[%s61] sm:$0x3]
  %s63 = scalar_lea.vmem %s0, 1
  %v64 = vld [vmem:[%s63] ss:$4 sm:$0xf]
  %66 = vset.pattern.permute.xlu0 0
  %67 = vperm.xlu0 %66, %v62
  %v68 = vpop.permute.xlu0 %67
  %v71 = vlaneseq
  %v72 = vshrl.u32 %v71, 7
  %v73 = vsub.s32 0, %v72
  %v74 = vrot.slane %v64, %v73
  %v75 = vlaneseq
  %v76 = vshrl.u32 %v75, 7
  %v77 = vsub.s32 1, %v76
  %v78 = vrot.slane %v64, %v77
  %v79 = vlaneseq
  %v80 = vshrl.u32 %v79, 7
  %v81 = vsub.s32 2, %v80
  %v82 = vrot.slane %v64, %v81
  %v83 = vlaneseq
  %v84 = vshrl.u32 %v83, 7
  %v85 = vsub.s32 3, %v84
  %v86 = vrot.slane %v64, %v85
  %v91 = vmul.f32 %v68, %v74
  %v92 = vmul.f32 %v68, %v78
  %v93 = vmul.f32 %v68, %v82
  %v94 = vmul.f32 %v68, %v86
  %v95 = vadd.f32 %v57, %v91
  %v96 = vadd.f32 %v58, %v92
  %v97 = vadd.f32 %v59, %v93
  %v98 = vadd.f32 %v60, %v94
  %s99 = scalar_lea.vmem %s1, 4
  %v100 = vld [vmem:[%s99] sm:$0x3]
  %s101 = scalar_lea.vmem %s0, 2
  %v102 = vld [vmem:[%s101] ss:$4 sm:$0xf]
  %104 = vset.pattern.permute.xlu0 0
  %105 = vperm.xlu0 %104, %v100
  %v106 = vpop.permute.xlu0 %105
  %v109 = vlaneseq
  %v110 = vshrl.u32 %v109, 7
  %v111 = vsub.s32 0, %v110
  %v112 = vrot.slane %v102, %v111
  %v113 = vlaneseq
  %v114 = vshrl.u32 %v113, 7
  %v115 = vsub.s32 1, %v114
  %v116 = vrot.slane %v102, %v115
  %v117 = vlaneseq
  %v118 = vshrl.u32 %v117, 7
  %v119 = vsub.s32 2, %v118
  %v120 = vrot.slane %v102, %v119
  %v121 = vlaneseq
  %v122 = vshrl.u32 %v121, 7
  %v123 = vsub.s32 3, %v122
  %v124 = vrot.slane %v102, %v123
  %v129 = vmul.f32 %v106, %v112
  %v130 = vmul.f32 %v106, %v116
  %v131 = vmul.f32 %v106, %v120
  %v132 = vmul.f32 %v106, %v124
  %v133 = vadd.f32 %v95, %v129
  %v134 = vadd.f32 %v96, %v130
  %v135 = vadd.f32 %v97, %v131
  %v136 = vadd.f32 %v98, %v132
  %s137 = scalar_lea.vmem %s1, 6
  %v138 = vld [vmem:[%s137] sm:$0x3]
  %s139 = scalar_lea.vmem %s0, 3
  %v140 = vld [vmem:[%s139] ss:$4 sm:$0xf]
  %142 = vset.pattern.permute.xlu0 0
  %143 = vperm.xlu0 %142, %v138
  %v144 = vpop.permute.xlu0 %143
  %v147 = vlaneseq
  %v148 = vshrl.u32 %v147, 7
  %v149 = vsub.s32 0, %v148
  %v150 = vrot.slane %v140, %v149
  %v151 = vlaneseq
  %v152 = vshrl.u32 %v151, 7
  %v153 = vsub.s32 1, %v152
  %v154 = vrot.slane %v140, %v153
  %v155 = vlaneseq
  %v156 = vshrl.u32 %v155, 7
  %v157 = vsub.s32 2, %v156
  %v158 = vrot.slane %v140, %v157
  %v159 = vlaneseq
  %v160 = vshrl.u32 %v159, 7
  %v161 = vsub.s32 3, %v160
  %v162 = vrot.slane %v140, %v161
  %v167 = vmul.f32 %v144, %v150
  %v168 = vmul.f32 %v144, %v154
  %v169 = vmul.f32 %v144, %v158
  %v170 = vmul.f32 %v144, %v162
  %v171 = vadd.f32 %v133, %v167
  %v172 = vadd.f32 %v134, %v168
  %v173 = vadd.f32 %v135, %v169
  %v174 = vadd.f32 %v136, %v170
  %vm175 = vcmask 1041408
  %v176 = vsel %vm175, %v171, 0.0
  %v177 = vsel %vm175, %v172, 0.0
  %v178 = vadd.f32 %v176, %v177
  %v179 = vsel %vm175, %v173, 0.0
  %v180 = vadd.f32 %v178, %v179
  %v181 = vsel %vm175, %v174, 0.0
  %v182 = vadd.f32 %v180, %v181
  %183 = vadd.xlane.f32.xlu0 %v182
  %v184 = vpop.xlane.xlu0 %183
  %v185 = vmul.f32 %v184, 0.001953125
  %v186 = vsub.f32 %v171, %v185
  %v187 = vsub.f32 %v172, %v185
  %v188 = vsub.f32 %v173, %v185
  %v189 = vsub.f32 %v174, %v185
  %v190 = vmul.f32 %v186, %v186
  %v191 = vmul.f32 %v187, %v187
  %v192 = vmul.f32 %v188, %v188
  %v193 = vmul.f32 %v189, %v189
  %v194 = vsel %vm175, %v190, 0.0
  %v195 = vsel %vm175, %v191, 0.0
  %v196 = vadd.f32 %v194, %v195
  %v197 = vsel %vm175, %v192, 0.0
  %v198 = vadd.f32 %v196, %v197
  %v199 = vsel %vm175, %v193, 0.0
  %v200 = vadd.f32 %v198, %v199
  %201 = vadd.xlane.f32.xlu0 %v200
  %v202 = vpop.xlane.xlu0 %201
  %v203 = vmul.f32 %v202, 0.001953125
  %v204 = vld [vmem:[%s2] sm:$0x3]
  %v205 = vadd.f32 %v203, 1e-05
  %v206 = vrsqrt.pop %v205
  %v207 = vmul.f32 %v206, %v204
  %209 = vset.pattern.permute.xlu0 0
  %210 = vperm.xlu0 %209, %v207
  %v211 = vpop.permute.xlu0 %210
  %v213 = vmul.f32 %v186, %v211
  %v214 = vmul.f32 %v187, %v211
  %v215 = vmul.f32 %v188, %v211
  %v216 = vmul.f32 %v189, %v211
  %v217 = vld [vmem:[%s3] sm:$0x3]
  %219 = vset.pattern.permute.xlu0 0
  %220 = vperm.xlu0 %219, %v217
  %v221 = vpop.permute.xlu0 %220
  %v223 = vadd.f32 %v213, %v221
  %v224 = vadd.f32 %v214, %v221
  %v225 = vadd.f32 %v215, %v221
  %v226 = vadd.f32 %v216, %v221
  %v227 = vmul.f32 %v223, 0.1
  %v228 = vmul.f32 %v224, 0.1
  %v229 = vmul.f32 %v225, 0.1
  %v230 = vmul.f32 %v226, 0.1
  %v231 = vmax.f32 %v223, %v227
  %v232 = vmax.f32 %v224, %v228
  %v233 = vmax.f32 %v225, %v229
  %v234 = vmax.f32 %v226, %v230
  %v237 = vcombine.low %v231, %v232
  %v239 = vunpack.c.l.s4 1983009808
  %v240 = vunpack.c.0.s8 %v239
  %v241 = vlaneseq
  %v242 = vshrl.u32 %v241, 7
  %v243 = vsub.s32 %v240, %v242
  %v244 = vrot.slane %v237, %v243
  %246 = vst [vmem:[#allocation2 + $0x2] sm:$0xf] %v244
  %v249 = vcombine.low %v233, %v234
  %v251 = vunpack.c.l.s4 1983009808
  %v252 = vunpack.c.0.s8 %v251
  %v253 = vlaneseq
  %v254 = vshrl.u32 %v253, 7
  %v255 = vsub.s32 %v252, %v254
  %v256 = vrot.slane %v249, %v255
  %258 = vst [vmem:[#allocation2 + $0x8] sm:$0xf] %v256
  %v259 = vlaneseq
  %v260 = vand.u32 %v259, 127
  %v261 = vadd.s32 %v260, 128
  %v262 = vadd.s32 %v260, 384
  %v263 = vadd.s32 %v260, 512
  %vm264 = vcmp.lt.s32.totalorder %v260, 0
  %v265 = vsub.s32 0, %v260
  %v266 = vsel %vm264, %v265, %v260
  %v267 = vshrl.u32 %v266, 4
  %v268 = vand.u32 %v266, 15
  %v269 = vsub.s32 0, %v268
  %v270 = vsel %vm264, %v269, %v268
  %vm271 = vcmp.lt.s32.totalorder %v261, 0
  %v272 = vsub.s32 0, %v261
  %v273 = vsel %vm271, %v272, %v261
  %v274 = vshrl.u32 %v273, 4
  %v275 = vand.u32 %v273, 15
  %v276 = vsub.s32 0, %v275
  %v277 = vsel %vm271, %v276, %v275
  %vm278 = vcmp.lt.s32.totalorder %v262, 0
  %v279 = vsub.s32 0, %v262
  %v280 = vsel %vm278, %v279, %v262
  %v281 = vshrl.u32 %v280, 4
  %v282 = vand.u32 %v280, 15
  %v283 = vsub.s32 0, %v282
  %v284 = vsel %vm278, %v283, %v282
  %vm285 = vcmp.lt.s32.totalorder %v263, 0
  %v286 = vsub.s32 0, %v263
  %v287 = vsel %vm285, %v286, %v263
  %v288 = vshrl.u32 %v287, 4
  %v289 = vand.u32 %v287, 15
  %v290 = vsub.s32 0, %v289
  %v291 = vsel %vm285, %v290, %v289
  %vm292 = vcmp.ne.s32.totalorder %v270, 0
  %vm293 = vcmp.ne.s32.totalorder %v277, 0
  %vm294 = vcmp.ne.s32.totalorder %v284, 0
  %vm295 = vcmp.ne.s32.totalorder %v291, 0
  %vm296 = vcmp.lt.s32.totalorder %v270, 0
  %vm297 = vcmp.lt.s32.totalorder %v277, 0
  %vm298 = vcmp.lt.s32.totalorder %v284, 0
  %vm299 = vcmp.lt.s32.totalorder %v291, 0
  %vm300 = vmand %vm296, %vm292
  %vm301 = vmand %vm297, %vm293
  %vm302 = vmand %vm298, %vm294
  %vm303 = vmand %vm299, %vm295
  %v304 = vadd.s32 %v270, 16
  %v305 = vadd.s32 %v277, 16
  %v306 = vadd.s32 %v284, 16
  %v307 = vadd.s32 %v291, 16
  %v308 = vsel %vm300, %v304, %v270
  %v309 = vsel %vm301, %v305, %v277
  %v310 = vsel %vm302, %v306, %v284
  %v311 = vsel %vm303, %v307, %v291
  %vm312 = vcmp.ne.s32.totalorder %v308, 0
  %vm313 = vcmp.ne.s32.totalorder %v309, 0
  %vm314 = vcmp.ne.s32.totalorder %v310, 0
  %vm315 = vcmp.ne.s32.totalorder %v311, 0
  %vm316 = vcmp.ne.s32.totalorder %v308, 15
  %vm317 = vcmp.ne.s32.totalorder %v309, 15
  %vm318 = vcmp.ne.s32.totalorder %v310, 15
  %vm319 = vcmp.ne.s32.totalorder %v311, 15
  %v320 = vld [vmem:[#allocation2] sm:$0xff]
  %v321 = vld [vmem:[#allocation2 + $0x8] sm:$0xf]
  %v322 = vsel %vm312, 1, 0
  %v323 = vsel %vm313, 1, 0
  %v324 = vsel %vm314, 1, 0
  %v325 = vsel %vm315, 1, 0
  %vm326 = vcmp.eq.s32.totalorder %v322, 1
  %vm327 = vcmp.eq.s32.totalorder %v323, 1
  %vm328 = vcmp.eq.s32.totalorder %v324, 1
  %vm329 = vcmp.eq.s32.totalorder %v325, 1
  %v332 = vcombine.high %v320, %v320
  %v334 = vunpack.c.l.s4 1983009808
  %v335 = vunpack.c.0.s8 %v334
  %v336 = vlaneseq
  %v337 = vshrl.u32 %v336, 7
  %v338 = vsub.s32 %v335, %v337
  %v339 = vrot.slane %v320, %v338
  %v341 = vunpack.c.l.s4 1983009808
  %v342 = vunpack.c.0.s8 %v341
  %v343 = vlaneseq
  %v344 = vshrl.u32 %v343, 7
  %v345 = vsub.s32 %v342, %v344
  %v346 = vrot.slane %v332, %v345
  %v347 = vcombine.high %v339, %v339
  %v348 = vcombine.high %v346, %v346
  %v350 = vunpack.c.l.s4 1983009808
  %v351 = vunpack.c.0.s8 %v350
  %v352 = vlaneseq
  %v353 = vshrl.u32 %v352, 7
  %v354 = vsub.s32 %v351, %v353
  %v355 = vrot.slane %v321, %v354
  %v356 = vcombine.high %v355, %v355
  %357 = vrot.lane.b32.xlu0 %v339, 17
  %v358 = vpop.permute.xlu0 %357
  %359 = vrot.lane.b32.xlu0 %v347, 17
  %v360 = vpop.permute.xlu0 %359
  %361 = vrot.lane.b32.xlu0 %v346, 17
  %v362 = vpop.permute.xlu0 %361
  %363 = vrot.lane.b32.xlu0 %v348, 17
  %v364 = vpop.permute.xlu0 %363
  %365 = vrot.lane.b32.xlu0 %v355, 17
  %v366 = vpop.permute.xlu0 %365
  %367 = vrot.lane.b32.xlu0 %v356, 17
  %v368 = vpop.permute.xlu0 %367
  %vm369 = vcmask 138240
  %v370 = vsel %vm369, %v358, %v360
  %v371 = vsel %vm369, %v360, %v362
  %v372 = vsel %vm369, %v364, %v366
  %v373 = vsel %vm369, %v366, %v368
  %v378 = vsel %vm326, %v370, 0.0
  %v379 = vsel %vm327, %v371, 0.0
  %v380 = vsel %vm328, %v372, 0.0
  %v381 = vsel %vm329, %v373, 0.0
  %v382 = vld [vmem:[%s4] sm:$0xf]
  %384 = vset.pattern.permute.xlu0 0
  %385 = vperm.xlu0 %384, %v382
  %v386 = vpop.permute.xlu0 %385
  %v388 = vlaneseq
  %v389 = vshrl.u32 %v388, 7
  %v390 = vsub.s32 0, %v389
  %v391 = vrot.slane %v378, %v390
  %v392 = vlaneseq
  %v393 = vshrl.u32 %v392, 7
  %v394 = vsub.s32 0, %v393
  %v395 = vrot.slane %v379, %v394
  %v396 = vlaneseq
  %v397 = vshrl.u32 %v396, 7
  %v398 = vsub.s32 0, %v397
  %v399 = vrot.slane %v380, %v398
  %v400 = vlaneseq
  %v401 = vshrl.u32 %v400, 7
  %v402 = vsub.s32 0, %v401
  %v403 = vrot.slane %v381, %v402
  %v404 = vmul.f32 %v386, %v391
  %v405 = vmul.f32 %v386, %v395
  %v406 = vmul.f32 %v386, %v399
  %v407 = vmul.f32 %v386, %v403
  %s408 = scalar_lea.vmem %s4, 36
  %v409 = vld [vmem:[%s408] sm:$0xf]
  %411 = vset.pattern.permute.xlu0 0
  %412 = vperm.xlu0 %411, %v409
  %v413 = vpop.permute.xlu0 %412
  %v415 = vlaneseq
  %v416 = vshrl.u32 %v415, 7
  %v417 = vsub.s32 1, %v416
  %v418 = vrot.slane %v378, %v417
  %v419 = vlaneseq
  %v420 = vshrl.u32 %v419, 7
  %v421 = vsub.s32 1, %v420
  %v422 = vrot.slane %v379, %v421
  %v423 = vlaneseq
  %v424 = vshrl.u32 %v423, 7
  %v425 = vsub.s32 1, %v424
  %v426 = vrot.slane %v380, %v425
  %v427 = vlaneseq
  %v428 = vshrl.u32 %v427, 7
  %v429 = vsub.s32 1, %v428
  %v430 = vrot.slane %v381, %v429
  %v431 = vmul.f32 %v413, %v418
  %v432 = vmul.f32 %v413, %v422
  %v433 = vmul.f32 %v413, %v426
  %v434 = vmul.f32 %v413, %v430
  %v435 = vadd.f32 %v404, %v431
  %v436 = vadd.f32 %v405, %v432
  %v437 = vadd.f32 %v406, %v433
  %v438 = vadd.f32 %v407, %v434
  %v439 = vld [vmem:[#allocation2] sm:$0xff]
  %v440 = vld [vmem:[#allocation2 + $0x8] sm:$0xf]
  %s441 = scalar_lea.vmem %s4, 4
  %v442 = vld [vmem:[%s441] sm:$0xf]
  %444 = vset.pattern.permute.xlu0 0
  %445 = vperm.xlu0 %444, %v442
  %v446 = vpop.permute.xlu0 %445
  %v450 = vlaneseq
  %v451 = vshrl.u32 %v450, 7
  %v452 = vsub.s32 0, %v451
  %v453 = vrot.slane %v439, %v452
  %v454 = vlaneseq
  %v455 = vshrl.u32 %v454, 7
  %v456 = vsub.s32 2, %v455
  %v457 = vrot.slane %v439, %v456
  %v458 = vlaneseq
  %v459 = vshrl.u32 %v458, 7
  %v460 = vsub.s32 4, %v459
  %v461 = vrot.slane %v439, %v460
  %v462 = vlaneseq
  %v463 = vshrl.u32 %v462, 7
  %v464 = vsub.s32 6, %v463
  %v465 = vrot.slane %v439, %v464
  %v466 = vlaneseq
  %v467 = vshrl.u32 %v466, 7
  %v468 = vsub.s32 0, %v467
  %v469 = vrot.slane %v440, %v468
  %v470 = vlaneseq
  %v471 = vshrl.u32 %v470, 7
  %v472 = vsub.s32 2, %v471
  %v473 = vrot.slane %v440, %v472
  %v480 = vlaneseq
  %v481 = vshrl.u32 %v480, 7
  %v482 = vsub.s32 0, %v481
  %v483 = vrot.slane %v453, %v482
  %v484 = vlaneseq
  %v485 = vshrl.u32 %v484, 7
  %v486 = vsub.s32 0, %v485
  %v487 = vrot.slane %v457, %v486
  %v488 = vlaneseq
  %v489 = vshrl.u32 %v488, 7
  %v490 = vsub.s32 0, %v489
  %v491 = vrot.slane %v461, %v490
  %v492 = vlaneseq
  %v493 = vshrl.u32 %v492, 7
  %v494 = vsub.s32 0, %v493
  %v495 = vrot.slane %v465, %v494
  %v496 = vlaneseq
  %v497 = vshrl.u32 %v496, 7
  %v498 = vsub.s32 0, %v497
  %v499 = vrot.slane %v469, %v498
  %v500 = vlaneseq
  %v501 = vshrl.u32 %v500, 7
  %v502 = vsub.s32 0, %v501
  %v503 = vrot.slane %v473, %v502
  %v504 = vmul.f32 %v446, %v483
  %v505 = vmul.f32 %v446, %v487
  %v506 = vmul.f32 %v446, %v491
  %v507 = vmul.f32 %v446, %v495
  %v508 = vmul.f32 %v446, %v499
  %v509 = vmul.f32 %v446, %v503
  %516 = vrot.lane.b32.xlu0 %v504, 16
  %v517 = vpop.permute.xlu0 %516
  %518 = vrot.lane.b32.xlu0 %v505, 16
  %v519 = vpop.permute.xlu0 %518
  %520 = vrot.lane.b32.xlu0 %v506, 16
  %v521 = vpop.permute.xlu0 %520
  %522 = vrot.lane.b32.xlu0 %v507, 16
  %v523 = vpop.permute.xlu0 %522
  %524 = vrot.lane.b32.xlu0 %v508, 16
  %v525 = vpop.permute.xlu0 %524
  %526 = vrot.lane.b32.xlu0 %v509, 16
  %v527 = vpop.permute.xlu0 %526
  %vm528 = vcmask 130048
  %v529 = vsel %vm528, %v517, %v519
  %v530 = vsel %vm528, %v519, %v521
  %v531 = vsel %vm528, %v523, %v525
  %v532 = vsel %vm528, %v525, %v527
  %v537 = vadd.f32 %v435, %v529
  %v538 = vadd.f32 %v436, %v530
  %v539 = vadd.f32 %v437, %v531
  %v540 = vadd.f32 %v438, %v532
  %s541 = scalar_lea.vmem %s4, 40
  %v542 = vld [vmem:[%s541] sm:$0xf]
  %544 = vset.pattern.permute.xlu0 0
  %545 = vperm.xlu0 %544, %v542
  %v546 = vpop.permute.xlu0 %545
  %v548 = vlaneseq
  %v549 = vshrl.u32 %v548, 7
  %v550 = vsub.s32 1, %v549
  %v551 = vrot.slane %v439, %v550
  %v552 = vlaneseq
  %v553 = vshrl.u32 %v552, 7
  %v554 = vsub.s32 3, %v553
  %v555 = vrot.slane %v439, %v554
  %v556 = vlaneseq
  %v557 = vshrl.u32 %v556, 7
  %v558 = vsub.s32 5, %v557
  %v559 = vrot.slane %v439, %v558
  %v560 = vlaneseq
  %v561 = vshrl.u32 %v560, 7
  %v562 = vsub.s32 7, %v561
  %v563 = vrot.slane %v439, %v562
  %v564 = vlaneseq
  %v565 = vshrl.u32 %v564, 7
  %v566 = vsub.s32 1, %v565
  %v567 = vrot.slane %v440, %v566
  %v568 = vlaneseq
  %v569 = vshrl.u32 %v568, 7
  %v570 = vsub.s32 3, %v569
  %v571 = vrot.slane %v440, %v570
  %v578 = vlaneseq
  %v579 = vshrl.u32 %v578, 7
  %v580 = vsub.s32 1, %v579
  %v581 = vrot.slane %v551, %v580
  %v582 = vlaneseq
  %v583 = vshrl.u32 %v582, 7
  %v584 = vsub.s32 1, %v583
  %v585 = vrot.slane %v555, %v584
  %v586 = vlaneseq
  %v587 = vshrl.u32 %v586, 7
  %v588 = vsub.s32 1, %v587
  %v589 = vrot.slane %v559, %v588
  %v590 = vlaneseq
  %v591 = vshrl.u32 %v590, 7
  %v592 = vsub.s32 1, %v591
  %v593 = vrot.slane %v563, %v592
  %v594 = vlaneseq
  %v595 = vshrl.u32 %v594, 7
  %v596 = vsub.s32 1, %v595
  %v597 = vrot.slane %v567, %v596
  %v598 = vlaneseq
  %v599 = vshrl.u32 %v598, 7
  %v600 = vsub.s32 1, %v599
  %v601 = vrot.slane %v571, %v600
  %v602 = vmul.f32 %v546, %v581
  %v603 = vmul.f32 %v546, %v585
  %v604 = vmul.f32 %v546, %v589
  %v605 = vmul.f32 %v546, %v593
  %v606 = vmul.f32 %v546, %v597
  %v607 = vmul.f32 %v546, %v601
  %614 = vrot.lane.b32.xlu0 %v602, 16
  %v615 = vpop.permute.xlu0 %614
  %616 = vrot.lane.b32.xlu0 %v603, 16
  %v617 = vpop.permute.xlu0 %616
  %618 = vrot.lane.b32.xlu0 %v604, 16
  %v619 = vpop.permute.xlu0 %618
  %620 = vrot.lane.b32.xlu0 %v605, 16
  %v621 = vpop.permute.xlu0 %620
  %622 = vrot.lane.b32.xlu0 %v606, 16
  %v623 = vpop.permute.xlu0 %622
  %624 = vrot.lane.b32.xlu0 %v607, 16
  %v625 = vpop.permute.xlu0 %624
  %v626 = vsel %vm528, %v615, %v617
  %v627 = vsel %vm528, %v617, %v619
  %v628 = vsel %vm528, %v621, %v623
  %v629 = vsel %vm528, %v623, %v625
  %v634 = vadd.f32 %v537, %v626
  %v635 = vadd.f32 %v538, %v627
  %v636 = vadd.f32 %v539, %v628
  %v637 = vadd.f32 %v540, %v629
  %v638 = vsel %vm316, 1, 0
  %v639 = vsel %vm317, 1, 0
  %v640 = vsel %vm318, 1, 0
  %v641 = vsel %vm319, 1, 0
  %vm642 = vcmp.eq.s32.totalorder %v638, 1
  %vm643 = vcmp.eq.s32.totalorder %v639, 1
  %vm644 = vcmp.eq.s32.totalorder %v640, 1
  %vm645 = vcmp.eq.s32.totalorder %v641, 1
  %v646 = vcombine.high %v439, %v439
  %v648 = vunpack.c.l.s4 1983009808
  %v649 = vunpack.c.0.s8 %v648
  %v650 = vlaneseq
  %v651 = vshrl.u32 %v650, 7
  %v652 = vsub.s32 %v649, %v651
  %v653 = vrot.slane %v439, %v652
  %v655 = vunpack.c.l.s4 1983009808
  %v656 = vunpack.c.0.s8 %v655
  %v657 = vlaneseq
  %v658 = vshrl.u32 %v657, 7
  %v659 = vsub.s32 %v656, %v658
  %v660 = vrot.slane %v646, %v659
  %v661 = vcombine.high %v653, %v653
  %v662 = vcombine.high %v660, %v660
  %v664 = vunpack.c.l.s4 1983009808
  %v665 = vunpack.c.0.s8 %v664
  %v666 = vlaneseq
  %v667 = vshrl.u32 %v666, 7
  %v668 = vsub.s32 %v665, %v667
  %v669 = vrot.slane %v440, %v668
  %v670 = vcombine.high %v669, %v669
  %671 = vrot.lane.b32.xlu0 %v653, 15
  %v672 = vpop.permute.xlu0 %671
  %673 = vrot.lane.b32.xlu0 %v661, 15
  %v674 = vpop.permute.xlu0 %673
  %675 = vrot.lane.b32.xlu0 %v660, 15
  %v676 = vpop.permute.xlu0 %675
  %677 = vrot.lane.b32.xlu0 %v662, 15
  %v678 = vpop.permute.xlu0 %677
  %679 = vrot.lane.b32.xlu0 %v669, 15
  %v680 = vpop.permute.xlu0 %679
  %681 = vrot.lane.b32.xlu0 %v670, 15
  %v682 = vpop.permute.xlu0 %681
  %vm683 = vcmask 121856
  %v684 = vsel %vm683, %v672, %v674
  %v685 = vsel %vm683, %v674, %v676
  %v686 = vsel %vm683, %v678, %v680
  %v687 = vsel %vm683, %v680, %v682
  %v692 = vsel %vm642, %v684, 0.0
  %v693 = vsel %vm643, %v685, 0.0
  %v694 = vsel %vm644, %v686, 0.0
  %v695 = vsel %vm645, %v687, 0.0
  %s696 = scalar_lea.vmem %s4, 8
  %v697 = vld [vmem:[%s696] sm:$0xf]
  %699 = vset.pattern.permute.xlu0 0
  %700 = vperm.xlu0 %699, %v697
  %v701 = vpop.permute.xlu0 %700
  %v703 = vlaneseq
  %v704 = vshrl.u32 %v703, 7
  %v705 = vsub.s32 0, %v704
  %v706 = vrot.slane %v692, %v705
  %v707 = vlaneseq
  %v708 = vshrl.u32 %v707, 7
  %v709 = vsub.s32 0, %v708
  %v710 = vrot.slane %v693, %v709
  %v711 = vlaneseq
  %v712 = vshrl.u32 %v711, 7
  %v713 = vsub.s32 0, %v712
  %v714 = vrot.slane %v694, %v713
  %v715 = vlaneseq
  %v716 = vshrl.u32 %v715, 7
  %v717 = vsub.s32 0, %v716
  %v718 = vrot.slane %v695, %v717
  %v719 = vmul.f32 %v701, %v706
  %v720 = vmul.f32 %v701, %v710
  %v721 = vmul.f32 %v701, %v714
  %v722 = vmul.f32 %v701, %v718
  %v723 = vadd.f32 %v634, %v719
  %v724 = vadd.f32 %v635, %v720
  %v725 = vadd.f32 %v636, %v721
  %v726 = vadd.f32 %v637, %v722
  %s727 = scalar_lea.vmem %s4, 44
  %v728 = vld [vmem:[%s727] sm:$0xf]
  %730 = vset.pattern.permute.xlu0 0
  %731 = vperm.xlu0 %730, %v728
  %v732 = vpop.permute.xlu0 %731
  %v734 = vlaneseq
  %v735 = vshrl.u32 %v734, 7
  %v736 = vsub.s32 1, %v735
  %v737 = vrot.slane %v692, %v736
  %v738 = vlaneseq
  %v739 = vshrl.u32 %v738, 7
  %v740 = vsub.s32 1, %v739
  %v741 = vrot.slane %v693, %v740
  %v742 = vlaneseq
  %v743 = vshrl.u32 %v742, 7
  %v744 = vsub.s32 1, %v743
  %v745 = vrot.slane %v694, %v744
  %v746 = vlaneseq
  %v747 = vshrl.u32 %v746, 7
  %v748 = vsub.s32 1, %v747
  %v749 = vrot.slane %v695, %v748
  %v750 = vmul.f32 %v732, %v737
  %v751 = vmul.f32 %v732, %v741
  %v752 = vmul.f32 %v732, %v745
  %v753 = vmul.f32 %v732, %v749
  %v754 = vadd.f32 %v723, %v750
  %v755 = vadd.f32 %v724, %v751
  %v756 = vadd.f32 %v725, %v752
  %v757 = vadd.f32 %v726, %v753
  %v758 = vld [vmem:[#allocation2] sm:$0xff]
  %v759 = vld [vmem:[#allocation2 + $0x8] sm:$0xf]
  %v762 = vcombine.high %v758, %v758
  %v764 = vunpack.c.l.s4 1983009808
  %v765 = vunpack.c.0.s8 %v764
  %v766 = vlaneseq
  %v767 = vshrl.u32 %v766, 7
  %v768 = vsub.s32 %v765, %v767
  %v769 = vrot.slane %v758, %v768
  %v771 = vunpack.c.l.s4 1983009808
  %v772 = vunpack.c.0.s8 %v771
  %v773 = vlaneseq
  %v774 = vshrl.u32 %v773, 7
  %v775 = vsub.s32 %v772, %v774
  %v776 = vrot.slane %v762, %v775
  %v777 = vcombine.high %v769, %v769
  %v778 = vcombine.high %v776, %v776
  %v780 = vunpack.c.l.s4 1983009808
  %v781 = vunpack.c.0.s8 %v780
  %v782 = vlaneseq
  %v783 = vshrl.u32 %v782, 7
  %v784 = vsub.s32 %v781, %v783
  %v785 = vrot.slane %v759, %v784
  %v786 = vcombine.high %v785, %v785
  %787 = vrot.lane.b32.xlu0 %v769, 1
  %v788 = vpop.permute.xlu0 %787
  %789 = vrot.lane.b32.xlu0 %v777, 1
  %v790 = vpop.permute.xlu0 %789
  %791 = vrot.lane.b32.xlu0 %v776, 1
  %v792 = vpop.permute.xlu0 %791
  %793 = vrot.lane.b32.xlu0 %v778, 1
  %v794 = vpop.permute.xlu0 %793
  %795 = vrot.lane.b32.xlu0 %v785, 1
  %v796 = vpop.permute.xlu0 %795
  %797 = vrot.lane.b32.xlu0 %v786, 1
  %v798 = vpop.permute.xlu0 %797
  %vm799 = vcmask 7168
  %v800 = vsel %vm799, %v788, %v790
  %v801 = vsel %vm799, %v790, %v792
  %v802 = vsel %vm799, %v794, %v796
  %v803 = vsel %vm799, %v796, %v798
  %v808 = vsel %vm326, %v800, 0.0
  %v809 = vsel %vm327, %v801, 0.0
  %v810 = vsel %vm328, %v802, 0.0
  %v811 = vsel %vm329, %v803, 0.0
  %s812 = scalar_lea.vmem %s4, 12
  %v813 = vld [vmem:[%s812] sm:$0xf]
  %815 = vset.pattern.permute.xlu0 0
  %816 = vperm.xlu0 %815, %v813
  %v817 = vpop.permute.xlu0 %816
  %v819 = vlaneseq
  %v820 = vshrl.u32 %v819, 7
  %v821 = vsub.s32 0, %v820
  %v822 = vrot.slane %v808, %v821
  %v823 = vlaneseq
  %v824 = vshrl.u32 %v823, 7
  %v825 = vsub.s32 0, %v824
  %v826 = vrot.slane %v809, %v825
  %v827 = vlaneseq
  %v828 = vshrl.u32 %v827, 7
  %v829 = vsub.s32 0, %v828
  %v830 = vrot.slane %v810, %v829
  %v831 = vlaneseq
  %v832 = vshrl.u32 %v831, 7
  %v833 = vsub.s32 0, %v832
  %v834 = vrot.slane %v811, %v833
  %v835 = vmul.f32 %v817, %v822
  %v836 = vmul.f32 %v817, %v826
  %v837 = vmul.f32 %v817, %v830
  %v838 = vmul.f32 %v817, %v834
  %v839 = vadd.f32 %v754, %v835
  %v840 = vadd.f32 %v755, %v836
  %v841 = vadd.f32 %v756, %v837
  %v842 = vadd.f32 %v757, %v838
  %s843 = scalar_lea.vmem %s4, 48
  %v844 = vld [vmem:[%s843] sm:$0xf]
  %846 = vset.pattern.permute.xlu0 0
  %847 = vperm.xlu0 %846, %v844
  %v848 = vpop.permute.xlu0 %847
  %v850 = vlaneseq
  %v851 = vshrl.u32 %v850, 7
  %v852 = vsub.s32 1, %v851
  %v853 = vrot.slane %v808, %v852
  %v854 = vlaneseq
  %v855 = vshrl.u32 %v854, 7
  %v856 = vsub.s32 1, %v855
  %v857 = vrot.slane %v809, %v856
  %v858 = vlaneseq
  %v859 = vshrl.u32 %v858, 7
  %v860 = vsub.s32 1, %v859
  %v861 = vrot.slane %v810, %v860
  %v862 = vlaneseq
  %v863 = vshrl.u32 %v862, 7
  %v864 = vsub.s32 1, %v863
  %v865 = vrot.slane %v811, %v864
  %v866 = vmul.f32 %v848, %v853
  %v867 = vmul.f32 %v848, %v857
  %v868 = vmul.f32 %v848, %v861
  %v869 = vmul.f32 %v848, %v865
  %v870 = vadd.f32 %v839, %v866
  %v871 = vadd.f32 %v840, %v867
  %v872 = vadd.f32 %v841, %v868
  %v873 = vadd.f32 %v842, %v869
  %v874 = vld [vmem:[#allocation2 + $0x2] sm:$0xff]
  %v875 = vld [vmem:[#allocation2 + $0xa] sm:$0x3]
  %s876 = scalar_lea.vmem %s4, 16
  %v877 = vld [vmem:[%s876] sm:$0xf]
  %879 = vset.pattern.permute.xlu0 0
  %880 = vperm.xlu0 %879, %v877
  %v881 = vpop.permute.xlu0 %880
  %v885 = vlaneseq
  %v886 = vshrl.u32 %v885, 7
  %v887 = vsub.s32 0, %v886
  %v888 = vrot.slane %v874, %v887
  %v889 = vlaneseq
  %v890 = vshrl.u32 %v889, 7
  %v891 = vsub.s32 2, %v890
  %v892 = vrot.slane %v874, %v891
  %v893 = vlaneseq
  %v894 = vshrl.u32 %v893, 7
  %v895 = vsub.s32 6, %v894
  %v896 = vrot.slane %v874, %v895
  %v897 = vlaneseq
  %v898 = vshrl.u32 %v897, 7
  %v899 = vsub.s32 0, %v898
  %v900 = vrot.slane %v875, %v899
  %v905 = vlaneseq
  %v906 = vshrl.u32 %v905, 7
  %v907 = vsub.s32 0, %v906
  %v908 = vrot.slane %v888, %v907
  %v909 = vlaneseq
  %v910 = vshrl.u32 %v909, 7
  %v911 = vsub.s32 0, %v910
  %v912 = vrot.slane %v892, %v911
  %v913 = vlaneseq
  %v914 = vshrl.u32 %v913, 7
  %v915 = vsub.s32 0, %v914
  %v916 = vrot.slane %v896, %v915
  %v917 = vlaneseq
  %v918 = vshrl.u32 %v917, 7
  %v919 = vsub.s32 0, %v918
  %v920 = vrot.slane %v900, %v919
  %v921 = vmul.f32 %v881, %v908
  %v922 = vmul.f32 %v881, %v912
  %v923 = vmul.f32 %v881, %v916
  %v924 = vmul.f32 %v881, %v920
  %v925 = vadd.f32 %v870, %v921
  %v926 = vadd.f32 %v871, %v922
  %v927 = vadd.f32 %v872, %v923
  %v928 = vadd.f32 %v873, %v924
  %s929 = scalar_lea.vmem %s4, 52
  %v930 = vld [vmem:[%s929] sm:$0xf]
  %932 = vset.pattern.permute.xlu0 0
  %933 = vperm.xlu0 %932, %v930
  %v934 = vpop.permute.xlu0 %933
  %v936 = vlaneseq
  %v937 = vshrl.u32 %v936, 7
  %v938 = vsub.s32 1, %v937
  %v939 = vrot.slane %v874, %v938
  %v940 = vlaneseq
  %v941 = vshrl.u32 %v940, 7
  %v942 = vsub.s32 3, %v941
  %v943 = vrot.slane %v874, %v942
  %v944 = vlaneseq
  %v945 = vshrl.u32 %v944, 7
  %v946 = vsub.s32 7, %v945
  %v947 = vrot.slane %v874, %v946
  %v948 = vlaneseq
  %v949 = vshrl.u32 %v948, 7
  %v950 = vsub.s32 1, %v949
  %v951 = vrot.slane %v875, %v950
  %v956 = vlaneseq
  %v957 = vshrl.u32 %v956, 7
  %v958 = vsub.s32 1, %v957
  %v959 = vrot.slane %v939, %v958
  %v960 = vlaneseq
  %v961 = vshrl.u32 %v960, 7
  %v962 = vsub.s32 1, %v961
  %v963 = vrot.slane %v943, %v962
  %v964 = vlaneseq
  %v965 = vshrl.u32 %v964, 7
  %v966 = vsub.s32 1, %v965
  %v967 = vrot.slane %v947, %v966
  %v968 = vlaneseq
  %v969 = vshrl.u32 %v968, 7
  %v970 = vsub.s32 1, %v969
  %v971 = vrot.slane %v951, %v970
  %v972 = vmul.f32 %v934, %v959
  %v973 = vmul.f32 %v934, %v963
  %v974 = vmul.f32 %v934, %v967
  %v975 = vmul.f32 %v934, %v971
  %v976 = vadd.f32 %v925, %v972
  %v977 = vadd.f32 %v926, %v973
  %v978 = vadd.f32 %v927, %v974
  %v979 = vadd.f32 %v928, %v975
  %v980 = vld [vmem:[#allocation2 + $0x2] sm:$0xff]
  %v981 = vld [vmem:[#allocation2 + $0xa] sm:$0xf]
  %v984 = vcombine.high %v980, %v980
  %v986 = vunpack.c.l.s4 1983009808
  %v987 = vunpack.c.0.s8 %v986
  %v988 = vlaneseq
  %v989 = vshrl.u32 %v988, 7
  %v990 = vsub.s32 %v987, %v989
  %v991 = vrot.slane %v980, %v990
  %v993 = vunpack.c.l.s4 1983009808
  %v994 = vunpack.c.0.s8 %v993
  %v995 = vlaneseq
  %v996 = vshrl.u32 %v995, 7
  %v997 = vsub.s32 %v994, %v996
  %v998 = vrot.slane %v984, %v997
  %v999 = vcombine.high %v991, %v991
  %v1000 = vcombine.high %v998, %v998
  %v1002 = vunpack.c.l.s4 1983009808
  %v1003 = vunpack.c.0.s8 %v1002
  %v1004 = vlaneseq
  %v1005 = vshrl.u32 %v1004, 7
  %v1006 = vsub.s32 %v1003, %v1005
  %v1007 = vrot.slane %v981, %v1006
  %v1008 = vcombine.high %v1007, %v1007
  %1009 = vrot.lane.b32.xlu0 %v991, 127
  %v1010 = vpop.permute.xlu0 %1009
  %1011 = vrot.lane.b32.xlu0 %v999, 127
  %v1012 = vpop.permute.xlu0 %1011
  %1013 = vrot.lane.b32.xlu0 %v998, 127
  %v1014 = vpop.permute.xlu0 %1013
  %1015 = vrot.lane.b32.xlu0 %v1000, 127
  %v1016 = vpop.permute.xlu0 %1015
  %1017 = vrot.lane.b32.xlu0 %v1007, 127
  %v1018 = vpop.permute.xlu0 %1017
  %1019 = vrot.lane.b32.xlu0 %v1008, 127
  %v1020 = vpop.permute.xlu0 %1019
  %vm1021 = vcmask 1039360
  %v1022 = vsel %vm1021, %v1010, %v1012
  %v1023 = vsel %vm1021, %v1012, %v1014
  %v1024 = vsel %vm1021, %v1016, %v1018
  %v1025 = vsel %vm1021, %v1018, %v1020
  %v1030 = vsel %vm642, %v1022, 0.0
  %v1031 = vsel %vm643, %v1023, 0.0
  %v1032 = vsel %vm644, %v1024, 0.0
  %v1033 = vsel %vm645, %v1025, 0.0
  %s1034 = scalar_lea.vmem %s4, 20
  %v1035 = vld [vmem:[%s1034] sm:$0xf]
  %1037 = vset.pattern.permute.xlu0 0
  %1038 = vperm.xlu0 %1037, %v1035
  %v1039 = vpop.permute.xlu0 %1038
  %v1041 = vlaneseq
  %v1042 = vshrl.u32 %v1041, 7
  %v1043 = vsub.s32 0, %v1042
  %v1044 = vrot.slane %v1030, %v1043
  %v1045 = vlaneseq
  %v1046 = vshrl.u32 %v1045, 7
  %v1047 = vsub.s32 0, %v1046
  %v1048 = vrot.slane %v1031, %v1047
  %v1049 = vlaneseq
  %v1050 = vshrl.u32 %v1049, 7
  %v1051 = vsub.s32 0, %v1050
  %v1052 = vrot.slane %v1032, %v1051
  %v1053 = vlaneseq
  %v1054 = vshrl.u32 %v1053, 7
  %v1055 = vsub.s32 0, %v1054
  %v1056 = vrot.slane %v1033, %v1055
  %v1057 = vmul.f32 %v1039, %v1044
  %v1058 = vmul.f32 %v1039, %v1048
  %v1059 = vmul.f32 %v1039, %v1052
  %v1060 = vmul.f32 %v1039, %v1056
  %v1061 = vadd.f32 %v976, %v1057
  %v1062 = vadd.f32 %v977, %v1058
  %v1063 = vadd.f32 %v978, %v1059
  %v1064 = vadd.f32 %v979, %v1060
  %s1065 = scalar_lea.vmem %s4, 56
  %v1066 = vld [vmem:[%s1065] sm:$0xf]
  %1068 = vset.pattern.permute.xlu0 0
  %1069 = vperm.xlu0 %1068, %v1066
  %v1070 = vpop.permute.xlu0 %1069
  %v1072 = vlaneseq
  %v1073 = vshrl.u32 %v1072, 7
  %v1074 = vsub.s32 1, %v1073
  %v1075 = vrot.slane %v1030, %v1074
  %v1076 = vlaneseq
  %v1077 = vshrl.u32 %v1076, 7
  %v1078 = vsub.s32 1, %v1077
  %v1079 = vrot.slane %v1031, %v1078
  %v1080 = vlaneseq
  %v1081 = vshrl.u32 %v1080, 7
  %v1082 = vsub.s32 1, %v1081
  %v1083 = vrot.slane %v1032, %v1082
  %v1084 = vlaneseq
  %v1085 = vshrl.u32 %v1084, 7
  %v1086 = vsub.s32 1, %v1085
  %v1087 = vrot.slane %v1033, %v1086
  %v1088 = vmul.f32 %v1070, %v1075
  %v1089 = vmul.f32 %v1070, %v1079
  %v1090 = vmul.f32 %v1070, %v1083
  %v1091 = vmul.f32 %v1070, %v1087
  %v1092 = vadd.f32 %v1061, %v1088
  %v1093 = vadd.f32 %v1062, %v1089
  %v1094 = vadd.f32 %v1063, %v1090
  %v1095 = vadd.f32 %v1064, %v1091
  %v1096 = vld [vmem:[#allocation2 + $0x2] sm:$0xff]
  %v1097 = vld [vmem:[#allocation2 + $0xa] sm:$0xf]
  %v1100 = vcombine.high %v1096, %v1096
  %v1102 = vunpack.c.l.s4 1983009808
  %v1103 = vunpack.c.0.s8 %v1102
  %v1104 = vlaneseq
  %v1105 = vshrl.u32 %v1104, 7
  %v1106 = vsub.s32 %v1103, %v1105
  %v1107 = vrot.slane %v1096, %v1106
  %v1109 = vunpack.c.l.s4 1983009808
  %v1110 = vunpack.c.0.s8 %v1109
  %v1111 = vlaneseq
  %v1112 = vshrl.u32 %v1111, 7
  %v1113 = vsub.s32 %v1110, %v1112
  %v1114 = vrot.slane %v1100, %v1113
  %v1115 = vcombine.high %v1107, %v1107
  %v1116 = vcombine.high %v1114, %v1114
  %v1118 = vunpack.c.l.s4 1983009808
  %v1119 = vunpack.c.0.s8 %v1118
  %v1120 = vlaneseq
  %v1121 = vshrl.u32 %v1120, 7
  %v1122 = vsub.s32 %v1119, %v1121
  %v1123 = vrot.slane %v1097, %v1122
  %v1124 = vcombine.high %v1123, %v1123
  %1125 = vrot.lane.b32.xlu0 %v1107, 113
  %v1126 = vpop.permute.xlu0 %1125
  %1127 = vrot.lane.b32.xlu0 %v1115, 113
  %v1128 = vpop.permute.xlu0 %1127
  %1129 = vrot.lane.b32.xlu0 %v1114, 113
  %v1130 = vpop.permute.xlu0 %1129
  %1131 = vrot.lane.b32.xlu0 %v1116, 113
  %v1132 = vpop.permute.xlu0 %1131
  %1133 = vrot.lane.b32.xlu0 %v1123, 113
  %v1134 = vpop.permute.xlu0 %1133
  %1135 = vrot.lane.b32.xlu0 %v1124, 113
  %v1136 = vpop.permute.xlu0 %1135
  %vm1137 = vcmask 924672
  %v1138 = vsel %vm1137, %v1126, %v1128
  %v1139 = vsel %vm1137, %v1128, %v1130
  %v1140 = vsel %vm1137, %v1132, %v1134
  %v1141 = vsel %vm1137, %v1134, %v1136
  %v1146 = vsel %vm326, %v1138, 0.0
  %v1147 = vsel %vm327, %v1139, 0.0
  %v1148 = vsel %vm328, %v1140, 0.0
  %v1149 = vsel %vm329, %v1141, 0.0
  %s1150 = scalar_lea.vmem %s4, 24
  %v1151 = vld [vmem:[%s1150] sm:$0xf]
  %1153 = vset.pattern.permute.xlu0 0
  %1154 = vperm.xlu0 %1153, %v1151
  %v1155 = vpop.permute.xlu0 %1154
  %v1157 = vlaneseq
  %v1158 = vshrl.u32 %v1157, 7
  %v1159 = vsub.s32 0, %v1158
  %v1160 = vrot.slane %v1146, %v1159
  %v1161 = vlaneseq
  %v1162 = vshrl.u32 %v1161, 7
  %v1163 = vsub.s32 0, %v1162
  %v1164 = vrot.slane %v1147, %v1163
  %v1165 = vlaneseq
  %v1166 = vshrl.u32 %v1165, 7
  %v1167 = vsub.s32 0, %v1166
  %v1168 = vrot.slane %v1148, %v1167
  %v1169 = vlaneseq
  %v1170 = vshrl.u32 %v1169, 7
  %v1171 = vsub.s32 0, %v1170
  %v1172 = vrot.slane %v1149, %v1171
  %v1173 = vmul.f32 %v1155, %v1160
  %v1174 = vmul.f32 %v1155, %v1164
  %v1175 = vmul.f32 %v1155, %v1168
  %v1176 = vmul.f32 %v1155, %v1172
  %v1177 = vadd.f32 %v1092, %v1173
  %v1178 = vadd.f32 %v1093, %v1174
  %v1179 = vadd.f32 %v1094, %v1175
  %v1180 = vadd.f32 %v1095, %v1176
  %s1181 = scalar_lea.vmem %s4, 60
  %v1182 = vld [vmem:[%s1181] sm:$0xf]
  %1184 = vset.pattern.permute.xlu0 0
  %1185 = vperm.xlu0 %1184, %v1182
  %v1186 = vpop.permute.xlu0 %1185
  %v1188 = vlaneseq
  %v1189 = vshrl.u32 %v1188, 7
  %v1190 = vsub.s32 1, %v1189
  %v1191 = vrot.slane %v1146, %v1190
  %v1192 = vlaneseq
  %v1193 = vshrl.u32 %v1192, 7
  %v1194 = vsub.s32 1, %v1193
  %v1195 = vrot.slane %v1147, %v1194
  %v1196 = vlaneseq
  %v1197 = vshrl.u32 %v1196, 7
  %v1198 = vsub.s32 1, %v1197
  %v1199 = vrot.slane %v1148, %v1198
  %v1200 = vlaneseq
  %v1201 = vshrl.u32 %v1200, 7
  %v1202 = vsub.s32 1, %v1201
  %v1203 = vrot.slane %v1149, %v1202
  %v1204 = vmul.f32 %v1186, %v1191
  %v1205 = vmul.f32 %v1186, %v1195
  %v1206 = vmul.f32 %v1186, %v1199
  %v1207 = vmul.f32 %v1186, %v1203
  %v1208 = vadd.f32 %v1177, %v1204
  %v1209 = vadd.f32 %v1178, %v1205
  %v1210 = vadd.f32 %v1179, %v1206
  %v1211 = vadd.f32 %v1180, %v1207
  %v1212 = vld [vmem:[#allocation2 + $0x2] sm:$0xff]
  %v1213 = vld [vmem:[#allocation2 + $0xa] sm:$0xf]
  %s1214 = scalar_lea.vmem %s4, 28
  %v1215 = vld [vmem:[%s1214] sm:$0xf]
  %1217 = vset.pattern.permute.xlu0 0
  %1218 = vperm.xlu0 %1217, %v1215
  %v1219 = vpop.permute.xlu0 %1218
  %v1223 = vlaneseq
  %v1224 = vshrl.u32 %v1223, 7
  %v1225 = vsub.s32 0, %v1224
  %v1226 = vrot.slane %v1212, %v1225
  %v1227 = vlaneseq
  %v1228 = vshrl.u32 %v1227, 7
  %v1229 = vsub.s32 2, %v1228
  %v1230 = vrot.slane %v1212, %v1229
  %v1231 = vlaneseq
  %v1232 = vshrl.u32 %v1231, 7
  %v1233 = vsub.s32 4, %v1232
  %v1234 = vrot.slane %v1212, %v1233
  %v1235 = vlaneseq
  %v1236 = vshrl.u32 %v1235, 7
  %v1237 = vsub.s32 6, %v1236
  %v1238 = vrot.slane %v1212, %v1237
  %v1239 = vlaneseq
  %v1240 = vshrl.u32 %v1239, 7
  %v1241 = vsub.s32 0, %v1240
  %v1242 = vrot.slane %v1213, %v1241
  %v1243 = vlaneseq
  %v1244 = vshrl.u32 %v1243, 7
  %v1245 = vsub.s32 2, %v1244
  %v1246 = vrot.slane %v1213, %v1245
  %v1253 = vlaneseq
  %v1254 = vshrl.u32 %v1253, 7
  %v1255 = vsub.s32 0, %v1254
  %v1256 = vrot.slane %v1226, %v1255
  %v1257 = vlaneseq
  %v1258 = vshrl.u32 %v1257, 7
  %v1259 = vsub.s32 0, %v1258
  %v1260 = vrot.slane %v1230, %v1259
  %v1261 = vlaneseq
  %v1262 = vshrl.u32 %v1261, 7
  %v1263 = vsub.s32 0, %v1262
  %v1264 = vrot.slane %v1234, %v1263
  %v1265 = vlaneseq
  %v1266 = vshrl.u32 %v1265, 7
  %v1267 = vsub.s32 0, %v1266
  %v1268 = vrot.slane %v1238, %v1267
  %v1269 = vlaneseq
  %v1270 = vshrl.u32 %v1269, 7
  %v1271 = vsub.s32 0, %v1270
  %v1272 = vrot.slane %v1242, %v1271
  %v1273 = vlaneseq
  %v1274 = vshrl.u32 %v1273, 7
  %v1275 = vsub.s32 0, %v1274
  %v1276 = vrot.slane %v1246, %v1275
  %v1277 = vmul.f32 %v1219, %v1256
  %v1278 = vmul.f32 %v1219, %v1260
  %v1279 = vmul.f32 %v1219, %v1264
  %v1280 = vmul.f32 %v1219, %v1268
  %v1281 = vmul.f32 %v1219, %v1272
  %v1282 = vmul.f32 %v1219, %v1276
  %1289 = vrot.lane.b32.xlu0 %v1277, 112
  %v1290 = vpop.permute.xlu0 %1289
  %1291 = vrot.lane.b32.xlu0 %v1278, 112
  %v1292 = vpop.permute.xlu0 %1291
  %1293 = vrot.lane.b32.xlu0 %v1279, 112
  %v1294 = vpop.permute.xlu0 %1293
  %1295 = vrot.lane.b32.xlu0 %v1280, 112
  %v1296 = vpop.permute.xlu0 %1295
  %1297 = vrot.lane.b32.xlu0 %v1281, 112
  %v1298 = vpop.permute.xlu0 %1297
  %1299 = vrot.lane.b32.xlu0 %v1282, 112
  %v1300 = vpop.permute.xlu0 %1299
  %vm1301 = vcmask 916480
  %v1302 = vsel %vm1301, %v1290, %v1292
  %v1303 = vsel %vm1301, %v1292, %v1294
  %v1304 = vsel %vm1301, %v1296, %v1298
  %v1305 = vsel %vm1301, %v1298, %v1300
  %v1310 = vadd.f32 %v1208, %v1302
  %v1311 = vadd.f32 %v1209, %v1303
  %v1312 = vadd.f32 %v1210, %v1304
  %v1313 = vadd.f32 %v1211, %v1305
  %s1314 = scalar_lea.vmem %s4, 64
  %v1315 = vld [vmem:[%s1314] sm:$0xf]
  %1317 = vset.pattern.permute.xlu0 0
  %1318 = vperm.xlu0 %1317, %v1315
  %v1319 = vpop.permute.xlu0 %1318
  %v1321 = vlaneseq
  %v1322 = vshrl.u32 %v1321, 7
  %v1323 = vsub.s32 1, %v1322
  %v1324 = vrot.slane %v1212, %v1323
  %v1325 = vlaneseq
  %v1326 = vshrl.u32 %v1325, 7
  %v1327 = vsub.s32 3, %v1326
  %v1328 = vrot.slane %v1212, %v1327
  %v1329 = vlaneseq
  %v1330 = vshrl.u32 %v1329, 7
  %v1331 = vsub.s32 5, %v1330
  %v1332 = vrot.slane %v1212, %v1331
  %v1333 = vlaneseq
  %v1334 = vshrl.u32 %v1333, 7
  %v1335 = vsub.s32 7, %v1334
  %v1336 = vrot.slane %v1212, %v1335
  %v1337 = vlaneseq
  %v1338 = vshrl.u32 %v1337, 7
  %v1339 = vsub.s32 1, %v1338
  %v1340 = vrot.slane %v1213, %v1339
  %v1341 = vlaneseq
  %v1342 = vshrl.u32 %v1341, 7
  %v1343 = vsub.s32 3, %v1342
  %v1344 = vrot.slane %v1213, %v1343
  %v1351 = vlaneseq
  %v1352 = vshrl.u32 %v1351, 7
  %v1353 = vsub.s32 1, %v1352
  %v1354 = vrot.slane %v1324, %v1353
  %v1355 = vlaneseq
  %v1356 = vshrl.u32 %v1355, 7
  %v1357 = vsub.s32 1, %v1356
  %v1358 = vrot.slane %v1328, %v1357
  %v1359 = vlaneseq
  %v1360 = vshrl.u32 %v1359, 7
  %v1361 = vsub.s32 1, %v1360
  %v1362 = vrot.slane %v1332, %v1361
  %v1363 = vlaneseq
  %v1364 = vshrl.u32 %v1363, 7
  %v1365 = vsub.s32 1, %v1364
  %v1366 = vrot.slane %v1336, %v1365
  %v1367 = vlaneseq
  %v1368 = vshrl.u32 %v1367, 7
  %v1369 = vsub.s32 1, %v1368
  %v1370 = vrot.slane %v1340, %v1369
  %v1371 = vlaneseq
  %v1372 = vshrl.u32 %v1371, 7
  %v1373 = vsub.s32 1, %v1372
  %v1374 = vrot.slane %v1344, %v1373
  %v1375 = vmul.f32 %v1319, %v1354
  %v1376 = vmul.f32 %v1319, %v1358
  %v1377 = vmul.f32 %v1319, %v1362
  %v1378 = vmul.f32 %v1319, %v1366
  %v1379 = vmul.f32 %v1319, %v1370
  %v1380 = vmul.f32 %v1319, %v1374
  %1387 = vrot.lane.b32.xlu0 %v1375, 112
  %v1388 = vpop.permute.xlu0 %1387
  %1389 = vrot.lane.b32.xlu0 %v1376, 112
  %v1390 = vpop.permute.xlu0 %1389
  %1391 = vrot.lane.b32.xlu0 %v1377, 112
  %v1392 = vpop.permute.xlu0 %1391
  %1393 = vrot.lane.b32.xlu0 %v1378, 112
  %v1394 = vpop.permute.xlu0 %1393
  %1395 = vrot.lane.b32.xlu0 %v1379, 112
  %v1396 = vpop.permute.xlu0 %1395
  %1397 = vrot.lane.b32.xlu0 %v1380, 112
  %v1398 = vpop.permute.xlu0 %1397
  %v1399 = vsel %vm1301, %v1388, %v1390
  %v1400 = vsel %vm1301, %v1390, %v1392
  %v1401 = vsel %vm1301, %v1394, %v1396
  %v1402 = vsel %vm1301, %v1396, %v1398
  %v1407 = vadd.f32 %v1310, %v1399
  %v1408 = vadd.f32 %v1311, %v1400
  %v1409 = vadd.f32 %v1312, %v1401
  %v1410 = vadd.f32 %v1313, %v1402
  %v1411 = vcombine.high %v1212, %v1212
  %v1413 = vunpack.c.l.s4 1983009808
  %v1414 = vunpack.c.0.s8 %v1413
  %v1415 = vlaneseq
  %v1416 = vshrl.u32 %v1415, 7
  %v1417 = vsub.s32 %v1414, %v1416
  %v1418 = vrot.slane %v1212, %v1417
  %v1420 = vunpack.c.l.s4 1983009808
  %v1421 = vunpack.c.0.s8 %v1420
  %v1422 = vlaneseq
  %v1423 = vshrl.u32 %v1422, 7
  %v1424 = vsub.s32 %v1421, %v1423
  %v1425 = vrot.slane %v1411, %v1424
  %v1426 = vcombine.high %v1418, %v1418
  %v1427 = vcombine.high %v1425, %v1425
  %v1429 = vunpack.c.l.s4 1983009808
  %v1430 = vunpack.c.0.s8 %v1429
  %v1431 = vlaneseq
  %v1432 = vshrl.u32 %v1431, 7
  %v1433 = vsub.s32 %v1430, %v1432
  %v1434 = vrot.slane %v1213, %v1433
  %v1435 = vcombine.high %v1434, %v1434
  %1436 = vrot.lane.b32.xlu0 %v1418, 111
  %v1437 = vpop.permute.xlu0 %1436
  %1438 = vrot.lane.b32.xlu0 %v1426, 111
  %v1439 = vpop.permute.xlu0 %1438
  %1440 = vrot.lane.b32.xlu0 %v1425, 111
  %v1441 = vpop.permute.xlu0 %1440
  %1442 = vrot.lane.b32.xlu0 %v1427, 111
  %v1443 = vpop.permute.xlu0 %1442
  %1444 = vrot.lane.b32.xlu0 %v1434, 111
  %v1445 = vpop.permute.xlu0 %1444
  %1446 = vrot.lane.b32.xlu0 %v1435, 111
  %v1447 = vpop.permute.xlu0 %1446
  %vm1448 = vcmask 908288
  %v1449 = vsel %vm1448, %v1437, %v1439
  %v1450 = vsel %vm1448, %v1439, %v1441
  %v1451 = vsel %vm1448, %v1443, %v1445
  %v1452 = vsel %vm1448, %v1445, %v1447
  %v1457 = vsel %vm642, %v1449, 0.0
  %v1458 = vsel %vm643, %v1450, 0.0
  %v1459 = vsel %vm644, %v1451, 0.0
  %v1460 = vsel %vm645, %v1452, 0.0
  %s1461 = scalar_lea.vmem %s4, 32
  %v1462 = vld [vmem:[%s1461] sm:$0xf]
  %1464 = vset.pattern.permute.xlu0 0
  %1465 = vperm.xlu0 %1464, %v1462
  %v1466 = vpop.permute.xlu0 %1465
  %v1468 = vlaneseq
  %v1469 = vshrl.u32 %v1468, 7
  %v1470 = vsub.s32 0, %v1469
  %v1471 = vrot.slane %v1457, %v1470
  %v1472 = vlaneseq
  %v1473 = vshrl.u32 %v1472, 7
  %v1474 = vsub.s32 0, %v1473
  %v1475 = vrot.slane %v1458, %v1474
  %v1476 = vlaneseq
  %v1477 = vshrl.u32 %v1476, 7
  %v1478 = vsub.s32 0, %v1477
  %v1479 = vrot.slane %v1459, %v1478
  %v1480 = vlaneseq
  %v1481 = vshrl.u32 %v1480, 7
  %v1482 = vsub.s32 0, %v1481
  %v1483 = vrot.slane %v1460, %v1482
  %v1484 = vmul.f32 %v1466, %v1471
  %v1485 = vmul.f32 %v1466, %v1475
  %v1486 = vmul.f32 %v1466, %v1479
  %v1487 = vmul.f32 %v1466, %v1483
  %v1488 = vadd.f32 %v1407, %v1484
  %v1489 = vadd.f32 %v1408, %v1485
  %v1490 = vadd.f32 %v1409, %v1486
  %v1491 = vadd.f32 %v1410, %v1487
  %s1492 = scalar_lea.vmem %s4, 68
  %v1493 = vld [vmem:[%s1492] sm:$0xf]
  %1495 = vset.pattern.permute.xlu0 0
  %1496 = vperm.xlu0 %1495, %v1493
  %v1497 = vpop.permute.xlu0 %1496
  %v1499 = vlaneseq
  %v1500 = vshrl.u32 %v1499, 7
  %v1501 = vsub.s32 1, %v1500
  %v1502 = vrot.slane %v1457, %v1501
  %v1503 = vlaneseq
  %v1504 = vshrl.u32 %v1503, 7
  %v1505 = vsub.s32 1, %v1504
  %v1506 = vrot.slane %v1458, %v1505
  %v1507 = vlaneseq
  %v1508 = vshrl.u32 %v1507, 7
  %v1509 = vsub.s32 1, %v1508
  %v1510 = vrot.slane %v1459, %v1509
  %v1511 = vlaneseq
  %v1512 = vshrl.u32 %v1511, 7
  %v1513 = vsub.s32 1, %v1512
  %v1514 = vrot.slane %v1460, %v1513
  %v1515 = vmul.f32 %v1497, %v1502
  %v1516 = vmul.f32 %v1497, %v1506
  %v1517 = vmul.f32 %v1497, %v1510
  %v1518 = vmul.f32 %v1497, %v1514
  %v1519 = vadd.f32 %v1488, %v1515
  %v1520 = vadd.f32 %v1489, %v1516
  %v1521 = vadd.f32 %v1490, %v1517
  %v1522 = vadd.f32 %v1491, %v1518
  %vm1523 = vcmask 1043456
  %v1524 = vsel %vm1523, %v1519, 0.0
  %v1525 = vsel %vm1523, %v1520, 0.0
  %v1526 = vadd.f32 %v1524, %v1525
  %1527 = vadd.xlane.f32.xlu0 %v1526
  %v1528 = vpop.xlane.xlu0 %1527
  %v1529 = vadd.f32 %v1528, 0.0
  %v1530 = vsel %vm1523, %v1521, 0.0
  %v1531 = vsel %vm1523, %v1522, 0.0
  %v1532 = vadd.f32 %v1530, %v1531
  %1533 = vadd.xlane.f32.xlu0 %v1532
  %v1534 = vpop.xlane.xlu0 %1533
  %v1535 = vadd.f32 %v1529, %v1534
  %v1536 = vmul.f32 %v1535, 0.001953125
  %v1537 = vsub.f32 %v1519, %v1536
  %v1538 = vsub.f32 %v1520, %v1536
  %v1539 = vsub.f32 %v1521, %v1536
  %v1540 = vsub.f32 %v1522, %v1536
  %v1541 = vmul.f32 %v1537, %v1537
  %v1542 = vmul.f32 %v1538, %v1538
  %v1543 = vsel %vm1523, %v1541, 0.0
  %v1544 = vsel %vm1523, %v1542, 0.0
  %v1545 = vadd.f32 %v1543, %v1544
  %1546 = vadd.xlane.f32.xlu0 %v1545
  %v1547 = vpop.xlane.xlu0 %1546
  %v1548 = vadd.f32 %v1547, 0.0
  %v1549 = vmul.f32 %v1539, %v1539
  %v1550 = vmul.f32 %v1540, %v1540
  %v1551 = vsel %vm1523, %v1549, 0.0
  %v1552 = vsel %vm1523, %v1550, 0.0
  %v1553 = vadd.f32 %v1551, %v1552
  %1554 = vadd.xlane.f32.xlu0 %v1553
  %v1555 = vpop.xlane.xlu0 %1554
  %v1556 = vadd.f32 %v1548, %v1555
  %v1557 = vmul.f32 %v1556, 0.001953125
  %v1558 = vld [vmem:[%s5] sm:$0xf]
  %v1559 = vadd.f32 %v1557, 1e-05
  %v1560 = vrsqrt.pop %v1559
  %v1561 = vmul.f32 %v1560, %v1558
  %v1562 = vld [vmem:[%s6] sm:$0xf]
  %1564 = vset.pattern.permute.xlu0 0
  %1565 = vperm.xlu0 %1564, %v1561
  %v1566 = vpop.permute.xlu0 %1565
  %v1568 = vmul.f32 %v1537, %v1566
  %v1569 = vmul.f32 %v1538, %v1566
  %1571 = vset.pattern.permute.xlu0 0
  %1572 = vperm.xlu0 %1571, %v1562
  %v1573 = vpop.permute.xlu0 %1572
  %v1575 = vadd.f32 %v1568, %v1573
  %v1576 = vadd.f32 %v1569, %v1573
  %v1577 = vmul.f32 %v1575, 0.1
  %v1578 = vmul.f32 %v1576, 0.1
  %v1579 = vmax.f32 %v1575, %v1577
  %v1580 = vmax.f32 %v1576, %v1578
  %v1581 = vld [vmem:[%s0] sm:$0xff]
  %v1584 = vcombine.low %v1579, %v1580
  %v1586 = vadd.f32 %v1581, %v1584
  %1587 = vst [vmem:[%s7] sm:$0xff] %v1586
  %v1588 = vmul.f32 %v1539, %v1566
  %v1589 = vmul.f32 %v1540, %v1566
  %v1590 = vadd.f32 %v1588, %v1573
  %v1591 = vadd.f32 %v1589, %v1573
  %v1592 = vmul.f32 %v1590, 0.1
  %v1593 = vmul.f32 %v1591, 0.1
  %v1594 = vmax.f32 %v1590, %v1592
  %v1595 = vmax.f32 %v1591, %v1593
  %v1596 = vld [vmem:[%s0 + $0x8] sm:$0xff]
  %v1599 = vcombine.low %v1594, %v1595
  %v1601 = vadd.f32 %v1596, %v1599
  %1602 = vst [vmem:[%s7 + $0x8] sm:$0xff] %v1601
  // Predicated region
  $region30: #{resblock_forward.1} parent=0 // pred_check
    _
  $region31: #{resblock_forward.1} parent=0 // pred_check_branch
    %1604 = sbr.rel (0) target = $region33
  $region32: #{resblock_forward.1} parent=0 // pred_region
    _
  $region33: #{resblock_forward.1} parent=0 // pred_fallthru
    _
  // Predicated region
  $region34: #{resblock_forward.1} parent=0 // pred_check
    _
  $region35: #{resblock_forward.1} parent=0 // pred_check_branch
    %1606 = sbr.rel (0) target = $region37
  $region36: #{resblock_forward.1} parent=0 // pred_region
    _
  $region37: #{resblock_forward.1} parent=0 // pred_fallthru
    _

</llo_original>
